<compile_context>
chip_gen: v7x
topology: tpu7x:2x2x1
jax: 0.10.0
libtpu: 0.0.40
codegen_flags: <defaults>
</compile_context>

<pallas_src>
import jax
import jax.numpy as jnp
from jax.experimental import pallas as pl
from jax.experimental.pallas import tpu as pltpu

HIDDEN = 8           # hidden_channels
F_PAD = 8            # padded per-type input feature dim (max feat dim rounded to 8)
SP_ROWS = 32         # rows of the packed small-parameter slab
NEG_SLOPE = 0.2      # HANConv default negative_slope
MASK_BIAS = -1e30    # additive bias for non-edges / padding

# small_pack row layout ([SP_ROWS, HIDDEN])
_R_BP = 0    # 3 rows: projection biases (ind, org, ext)
_R_AV = 3    # 6 rows: attention vectors (src,dst) x (txn, rev_txn, owns)
_R_KW = 9    # 8 rows: k_lin weight (pre-transposed, [H, H])
_R_KB = 17   # 1 row : k_lin bias
_R_Q = 18    # 1 row : semantic query q
_R_HW = 19   # 8 rows: head weights padded to [H, H] (col0 = lin_ind, col1 = lin_org)
_R_HB = 27   # 1 row : head biases [b_ind, b_org, 0, ...]


# --------------------------------------------------------------------------- #
# Fused Pallas kernel: whole HAN1Layer forward for one graph
# --------------------------------------------------------------------------- #
def _han1_kernel(xi_ref, xo_ref, xe_ref, bias_ref, wp_ref, sp_ref, yi_ref, yo_ref):
    f32 = jnp.float32
    ni, fi = xi_ref.shape
    no, fo = xo_ref.shape
    ne, fe = xe_ref.shape

    sp = sp_ref[...]                                                 # [32, H]

    # ---- HANConv per-node-type projections (heads=1) --------------------------
    h_ind = jnp.dot(xi_ref[...], wp_ref[0][:fi, :],
                    preferred_element_type=f32) + sp[_R_BP + 0:_R_BP + 1]
    h_org = jnp.dot(xo_ref[...], wp_ref[1][:fo, :],
                    preferred_element_type=f32) + sp[_R_BP + 1:_R_BP + 2]
    h_ext = jnp.dot(xe_ref[...], wp_ref[2][:fe, :],
                    preferred_element_type=f32) + sp[_R_BP + 2:_R_BP + 3]

    # ---- per-edge-type masked attention ---------------------------------------
    def edge_attention(h_src, h_dst, a_src, a_dst, bias):
        # logits[i, j] = leaky_relu(<h_dst[i], a_dst> + <h_src[j], a_src>) + bias[i, j]
        d = jnp.sum(h_dst * a_dst, axis=-1, keepdims=True)           # [Nd, 1]
        s = jnp.sum(h_src * a_src, axis=-1, keepdims=True)           # [Ns, 1]
        logits = d + jnp.transpose(s)                                 # broadcast add [Nd, Ns]
        logits = jnp.where(logits >= 0.0, logits, NEG_SLOPE * logits)
        logits = logits + bias                                        # additive mask (0 / -1e30)
        m = jnp.max(logits, axis=-1, keepdims=True)
        m = jnp.where(m < -1e29, 0.0, m)                              # rows with no in-edges
        e = jnp.exp(logits - m)                                       # masked entries underflow to 0
        denom = jnp.sum(e, axis=-1, keepdims=True)
        p = e * pl.reciprocal(jnp.where(denom > 0.0, denom, 1.0), approx=True)
        out = jnp.dot(p, h_src, preferred_element_type=f32)
        return jnp.maximum(out, 0.0)                                  # F.relu in HANConv

    # bias slots: 0 = txn (ind->org), 1 = rev_txn (org->ind), 2 = owns (ext->ind)
    out_txn = edge_attention(h_ind, h_org,
                             sp[_R_AV + 0:_R_AV + 1], sp[_R_AV + 1:_R_AV + 2],
                             bias_ref[0][:no, :ni])                   # -> 'org'
    out_rtx = edge_attention(h_org, h_ind,
                             sp[_R_AV + 2:_R_AV + 3], sp[_R_AV + 3:_R_AV + 4],
                             bias_ref[1][:ni, :no])                   # -> 'ind'
    out_own = edge_attention(h_ext, h_ind,
                             sp[_R_AV + 4:_R_AV + 5], sp[_R_AV + 5:_R_AV + 6],
                             bias_ref[2][:ni, :ne])                   # -> 'ind'

    # ---- semantic (metapath-level) attention -----------------------------------
    # 'org' receives a single metapath -> softmax over one score == identity.
    kwt = sp[_R_KW:_R_KW + HIDDEN]                                    # [H, H]
    kb = sp[_R_KB:_R_KB + 1]
    q = sp[_R_Q:_R_Q + 1]

    def sem_score(o):
        t = jnp.tanh(jnp.dot(o, kwt, preferred_element_type=f32) + kb)
        mean = jnp.sum(t, axis=0, keepdims=True) * (1.0 / o.shape[0])
        return jnp.sum(q * mean, axis=1, keepdims=True)               # [1, 1]

    s0 = sem_score(out_rtx)
    s1 = sem_score(out_own)
    mx = jnp.maximum(s0, s1)
    e0 = jnp.exp(s0 - mx)
    e1 = jnp.exp(s1 - mx)
    inv = 1.0 / (e0 + e1)
    z_ind = (e0 * inv) * out_rtx + (e1 * inv) * out_own
    z_org = out_txn

    # ---- packed prediction heads + numerically-safe sigmoid (lane-dense store) --
    hw = sp[_R_HW:_R_HW + HIDDEN]                                     # [H, H] (cols 0/1 valid)
    hb = sp[_R_HB:_R_HB + 1]                                          # [1, H]

    def stable_sigmoid(y):
        ey = jnp.exp(-jnp.abs(y))
        return jnp.where(y >= 0.0, 1.0 / (1.0 + ey), ey / (1.0 + ey))

    yi_ref[...] = stable_sigmoid(jnp.dot(z_ind, hw, preferred_element_type=f32) + hb)
    yo_ref[...] = stable_sigmoid(jnp.dot(z_org, hw, preferred_element_type=f32) + hb)


# --------------------------------------------------------------------------- #
# Cost hint (kernel is launch/issue-bound; keep XLA from over-weighting it)
# --------------------------------------------------------------------------- #
def _cost_estimate(n_ind, n_org, n_ext, n_max, n_graphs=1):
    flops = 2 * (n_ind + n_org + n_ext) * F_PAD * HIDDEN                 # projections
    for nd, ns in ((n_org, n_ind), (n_ind, n_org), (n_ind, n_ext)):
        flops += 8 * nd * ns + 2 * nd * ns * HIDDEN                      # logits/softmax + p @ h
    flops += 2 * 2 * n_ind * HIDDEN * HIDDEN                             # semantic k_lin
    flops += 2 * (n_ind + n_org) * HIDDEN * HIDDEN                       # prediction heads
    trans = n_org * n_ind + n_ind * n_org + n_ind * n_ext                # softmax exps
    trans += 2 * n_ind * HIDDEN + (n_ind + n_org) * HIDDEN               # tanh + sigmoid
    bytes_ = 4 * ((n_ind + n_org + n_ext) * F_PAD + 3 * n_max * n_max
                  + 3 * F_PAD * HIDDEN + SP_ROWS * HIDDEN
                  + (n_ind + n_org) * HIDDEN)
    return pl.CostEstimate(flops=int(flops * n_graphs),
                           transcendentals=int(trans * n_graphs),
                           bytes_accessed=int(bytes_ * n_graphs))


# --------------------------------------------------------------------------- #
# Wrappers
# --------------------------------------------------------------------------- #
def han1layer_forward(params, x_dict, bias_pack, edge_attr_dict=None):
    """Single-graph HAN1Layer.forward.  `edge_attr_dict` accepted but unused
    (HANConv ignores edge attributes).  Grid-less pallas_call: no pipeline
    buffers are set up for a single step."""
    xi, xo, xe = x_dict["ind"], x_dict["org"], x_dict["ext"]
    ni, no, ne = xi.shape[0], xo.shape[0], xe.shape[0]
    n_max = bias_pack.shape[-1]
    yi, yo = pl.pallas_call(
        _han1_kernel,
        out_shape=(jax.ShapeDtypeStruct((ni, HIDDEN), jnp.float32),
                   jax.ShapeDtypeStruct((no, HIDDEN), jnp.float32)),
        cost_estimate=_cost_estimate(ni, no, ne, n_max),
    )(xi, xo, xe, bias_pack, params["proj_pack"], params["small_pack"])
    return yi[:, 0], yo[:, 1]


def _per_graph_spec(shape):
    trailing = len(shape) - 1
    return pl.BlockSpec((None,) + tuple(shape[1:]),
                        lambda g, _t=trailing: (g,) + (0,) * _t)


def _shared_spec(shape):
    nd = len(shape)
    return pl.BlockSpec(tuple(shape), lambda g, _n=nd: (0,) * _n)


def han1layer_forward_batched(params, x_batch, bias_batch):
    """Many graphs in ONE pallas_call: leading grid axis over graphs, marked
    "parallel" so v7x's two TensorCores split it; launch/prologue overhead is
    amortised over the batch on all generations."""
    xi, xo, xe = x_batch["ind"], x_batch["org"], x_batch["ext"]
    g, ni = xi.shape[0], xi.shape[1]
    no, ne = xo.shape[1], xe.shape[1]
    n_max = bias_batch.shape[-1]
    wp, sp = params["proj_pack"], params["small_pack"]
    yi, yo = pl.pallas_call(
        _han1_kernel,
        out_shape=(jax.ShapeDtypeStruct((g, ni, HIDDEN), jnp.float32),
                   jax.ShapeDtypeStruct((g, no, HIDDEN), jnp.float32)),
        grid=(g,),
        in_specs=[_per_graph_spec(xi.shape), _per_graph_spec(xo.shape),
                  _per_graph_spec(xe.shape), _per_graph_spec(bias_batch.shape),
                  _shared_spec(wp.shape), _shared_spec(sp.shape)],
        out_specs=(_per_graph_spec((g, ni, HIDDEN)),
                   _per_graph_spec((g, no, HIDDEN))),
        compiler_params=pltpu.CompilerParams(dimension_semantics=("parallel",)),
        cost_estimate=_cost_estimate(ni, no, ne, n_max, n_graphs=g),
    )(xi, xo, xe, bias_batch, wp, sp)
    return yi[:, :, 0], yo[:, :, 1]


# --------------------------------------------------------------------------- #
# One-time graph preprocessing: sparse edges -> packed additive-bias masks
# --------------------------------------------------------------------------- #
def build_bias_pack(edge_index_dict, num_nodes, n_max=None):
    # TODO(synk): sparse edge_index -> dense additive-bias mask is built once per
    # graph on the host; at toy sizes dense masked attention maps best onto the MXU.
    # A CSR / scalar-prefetch path would be needed for large graphs.
    if n_max is None:
        n_max = max(num_nodes.values())
    slots = {("ind", "txn", "org"): 0,
             ("org", "rev_txn", "ind"): 1,
             ("ext", "owns", "ind"): 2}
    bias = jnp.full((3, n_max, n_max), MASK_BIAS, jnp.float32)
    for et, slot in slots.items():
        # ('ind','rev_owns','ext') only feeds x_dict['ext'], which the module never
        # reads (heads use 'ind'/'org' only) -> output-equivalent to skip.
        ei = edge_index_dict[et]
        # PyG's edge-wise softmax would count parallel edges separately; this dense
        # formulation assumes a simple graph, so assert there are no duplicates.
        enc = ei[1].astype(jnp.int32) * n_max + ei[0].astype(jnp.int32)
        assert int(jnp.unique(enc).shape[0]) == int(ei.shape[1]), \
            f"duplicate edges in {et}: dense-mask attention would diverge from PyG"
        bias = bias.at[slot, ei[1], ei[0]].set(0.0)
    return bias


# --------------------------------------------------------------------------- #
# Deterministic parameter construction (pre-transposed / packed layouts)
# --------------------------------------------------------------------------- #
def init_params(key, feat_dims):
    ks = jax.random.split(key, 8)

    def lin(kk, out_f, in_f, scale=0.3):
        kw, kb = jax.random.split(kk)
        W = scale * jax.random.normal(kw, (out_f, in_f), jnp.float32)  # torch layout
        b = scale * jax.random.normal(kb, (out_f,), jnp.float32)
        return W, b

    # HANConv per-node-type projections Linear(in_t, HIDDEN)
    Wi, bi = lin(ks[0], HIDDEN, feat_dims["ind"])
    Wo, bo = lin(ks[1], HIDDEN, feat_dims["org"])
    We, be = lin(ks[2], HIDDEN, feat_dims["ext"])
    # per-edge-type attention vectors lin_src/lin_dst (PyG shape [1, heads, H])
    # rows: 0/1 = txn(src,dst), 2/3 = rev_txn(src,dst), 4/5 = owns(src,dst)
    attn_vecs = 0.3 * jax.random.normal(ks[3], (6, HIDDEN), jnp.float32)
    # semantic attention: k_lin = Linear(H, H), query q
    Wk, bk = lin(ks[4], HIDDEN, HIDDEN)
    q = 0.3 * jax.random.normal(ks[5], (1, HIDDEN), jnp.float32)
    # prediction heads lin_ind / lin_org = Linear(HIDDEN, 1)
    W_hi, b_hi = lin(ks[6], 1, HIDDEN)
    W_ho, b_ho = lin(ks[7], 1, HIDDEN)

    def pad_t(W):   # [H, F] torch layout -> [F_PAD, H] pre-transposed, zero padded
        Wt = W.T
        return jnp.zeros((F_PAD, HIDDEN), jnp.float32).at[:Wt.shape[0], :].set(Wt)

    proj_pack = jnp.stack([pad_t(Wi), pad_t(Wo), pad_t(We)])           # [3, F_PAD, H]

    head_w = jnp.zeros((HIDDEN, HIDDEN), jnp.float32)
    head_w = head_w.at[:, 0].set(W_hi[0]).at[:, 1].set(W_ho[0])        # cols 0/1 valid
    head_b = jnp.zeros((HIDDEN,), jnp.float32).at[0].set(b_hi[0]).at[1].set(b_ho[0])

    sp = jnp.zeros((SP_ROWS, HIDDEN), jnp.float32)
    sp = sp.at[_R_BP + 0].set(bi).at[_R_BP + 1].set(bo).at[_R_BP + 2].set(be)
    sp = sp.at[_R_AV:_R_AV + 6].set(attn_vecs)
    sp = sp.at[_R_KW:_R_KW + HIDDEN].set(Wk.T)
    sp = sp.at[_R_KB].set(bk)
    sp = sp.at[_R_Q].set(q[0])
    sp = sp.at[_R_HW:_R_HW + HIDDEN].set(head_w)
    sp = sp.at[_R_HB].set(head_b)

    return {"proj_pack": proj_pack, "small_pack": sp}


# --------------------------------------------------------------------------- #
if __name__ == "__main__":
    key = jax.random.PRNGKey(0)

    node_types = ["ind", "org", "ext"]
    edge_types = [
        ("ind", "txn", "org"),
        ("org", "rev_txn", "ind"),
        ("ext", "owns", "ind"),
        ("ind", "rev_owns", "ext"),
    ]
    n_nodes = {"ind": 16, "org": 12, "ext": 8}
    feat_dims = {"ind": 6, "org": 5, "ext": 4}
    num_features_txn_edge = 3
    N_GRAPHS = 4

    k_graphs, k_p = jax.random.split(key)
    params = init_params(k_p, feat_dims)

    # build a small batch of deterministic graphs
    x_graphs, bias_graphs, edge_index_graphs = [], [], []
    for kg in jax.random.split(k_graphs, N_GRAPHS):
        k_x, k_e = jax.random.split(kg)
        x_dict = {
            nt: jax.random.normal(kk, (n_nodes[nt], feat_dims[nt]), jnp.float32)
            for nt, kk in zip(node_types, jax.random.split(k_x, len(node_types)))
        }
        edge_index_dict = {}
        for et, kk in zip(edge_types, jax.random.split(k_e, len(edge_types))):
            src, _, dst = et
            adj = jax.random.bernoulli(kk, 0.35, (n_nodes[src], n_nodes[dst]))
            s_idx, d_idx = jnp.nonzero(adj)
            edge_index_dict[et] = jnp.stack([s_idx, d_idx]).astype(jnp.int32)   # [2, E]
        x_graphs.append(x_dict)
        edge_index_graphs.append(edge_index_dict)
        bias_graphs.append(build_bias_pack(edge_index_dict, n_nodes))

    # edge attributes (unused by HANConv, present for interface fidelity)
    e0 = edge_index_graphs[0][("ind", "txn", "org")]
    edge_attr_dict = {
        ("ind", "txn", "org"): jax.random.normal(
            jax.random.PRNGKey(7), (int(e0.shape[1]), num_features_txn_edge), jnp.float32)
    }

    # ---- single-graph, grid-less forward --------------------------------------
    fwd = jax.jit(han1layer_forward)
    pred_ind, pred_org = fwd(params, x_graphs[0], bias_graphs[0], edge_attr_dict)

    # ---- batched forward: graph axis on the grid, "parallel" for v7x megacore ---
    x_batch = {nt: jnp.stack([g[nt] for g in x_graphs]) for nt in node_types}
    bias_batch = jnp.stack(bias_graphs)
    fwd_b = jax.jit(han1layer_forward_batched)
    pred_ind_b, pred_org_b = fwd_b(params, x_batch, bias_batch)

    (pred_ind, pred_org, pred_ind_b, pred_org_b) = jax.block_until_ready(
        (pred_ind, pred_org, pred_ind_b, pred_org_b))

    assert pred_ind.shape == (n_nodes["ind"],)
    assert pred_org.shape == (n_nodes["org"],)
    assert pred_ind_b.shape == (N_GRAPHS, n_nodes["ind"])
    assert pred_org_b.shape == (N_GRAPHS, n_nodes["org"])
    for p in (pred_ind, pred_org, pred_ind_b, pred_org_b):
        assert bool(jnp.all(jnp.isfinite(p)))
        assert bool(jnp.all((p > 0.0) & (p < 1.0)))
    # batched graph 0 must reproduce the single-graph path
    assert bool(jnp.allclose(pred_ind_b[0], pred_ind, atol=1e-5, rtol=1e-5))
    assert bool(jnp.allclose(pred_org_b[0], pred_org, atol=1e-5, rtol=1e-5))
    print("KERNEL_OK")
</pallas_src>

<mosaic_0001>
module attributes {stable_mosaic.version = 11 : i64} {
  func.func @_han1_kernel(%arg0: memref<16x6xf32, #tpu.memory_space<vmem>>, %arg1: memref<12x5xf32, #tpu.memory_space<vmem>>, %arg2: memref<8x4xf32, #tpu.memory_space<vmem>>, %arg3: memref<3x16x16xf32, #tpu.memory_space<vmem>>, %arg4: memref<3x8x8xf32, #tpu.memory_space<vmem>>, %arg5: memref<32x8xf32, #tpu.memory_space<vmem>>, %arg6: memref<16x8xf32, #tpu.memory_space<vmem>>, %arg7: memref<12x8xf32, #tpu.memory_space<vmem>>) attributes {dimension_semantics = [], scalar_prefetch = 0 : i64, scratch_operands = 0 : i64, tpu.core_type = #tpu.core_type<tc>} {
    %c0 = arith.constant 0 : index
    %c0_0 = arith.constant 0 : index
    %0 = vector.load %arg5[%c0, %c0_0] : memref<32x8xf32, #tpu.memory_space<vmem>>, vector<32x8xf32>
    %c0_1 = arith.constant 0 : index
    %c0_2 = arith.constant 0 : index
    %1 = vector.load %arg0[%c0_1, %c0_2] : memref<16x6xf32, #tpu.memory_space<vmem>>, vector<16x6xf32>
    %c0_3 = arith.constant 0 : index
    %c0_4 = arith.constant 0 : index
    %c0_5 = arith.constant 0 : index
    %2 = vector.load %arg4[%c0_3, %c0_4, %c0_5] : memref<3x8x8xf32, #tpu.memory_space<vmem>>, vector<1x8x8xf32>
    %3 = vector.shape_cast %2 : vector<1x8x8xf32> to vector<8x8xf32>
    %4 = vector.extract_strided_slice %3 {offsets = [0, 0], sizes = [6, 8], strides = [1, 1]} : vector<8x8xf32> to vector<6x8xf32>
    %cst = arith.constant dense<0.000000e+00> : vector<16x8xf32>
    %5 = tpu.matmul %1, %4, %cst {dimension_numbers = #tpu.dot_dimension_numbers<[1], [0], [0], [1], [0, 0, 1, 1], [], []>} : vector<16x6xf32>, vector<6x8xf32>, vector<16x8xf32> -> vector<16x8xf32>
    %6 = vector.extract_strided_slice %0 {offsets = [0, 0], sizes = [1, 8], strides = [1, 1]} : vector<32x8xf32> to vector<1x8xf32>
    %7 = vector.broadcast %6 : vector<1x8xf32> to vector<16x8xf32>
    %8 = arith.addf %5, %7 : vector<16x8xf32>
    %c0_6 = arith.constant 0 : index
    %c0_7 = arith.constant 0 : index
    %9 = vector.load %arg1[%c0_6, %c0_7] : memref<12x5xf32, #tpu.memory_space<vmem>>, vector<12x5xf32>
    %c1 = arith.constant 1 : index
    %c0_8 = arith.constant 0 : index
    %c0_9 = arith.constant 0 : index
    %10 = vector.load %arg4[%c1, %c0_8, %c0_9] : memref<3x8x8xf32, #tpu.memory_space<vmem>>, vector<1x8x8xf32>
    %11 = vector.shape_cast %10 : vector<1x8x8xf32> to vector<8x8xf32>
    %12 = vector.extract_strided_slice %11 {offsets = [0, 0], sizes = [5, 8], strides = [1, 1]} : vector<8x8xf32> to vector<5x8xf32>
    %cst_10 = arith.constant dense<0.000000e+00> : vector<12x8xf32>
    %13 = tpu.matmul %9, %12, %cst_10 {dimension_numbers = #tpu.dot_dimension_numbers<[1], [0], [0], [1], [0, 0, 1, 1], [], []>} : vector<12x5xf32>, vector<5x8xf32>, vector<12x8xf32> -> vector<12x8xf32>
    %14 = vector.extract_strided_slice %0 {offsets = [1, 0], sizes = [1, 8], strides = [1, 1]} : vector<32x8xf32> to vector<1x8xf32>
    %15 = vector.broadcast %14 : vector<1x8xf32> to vector<12x8xf32>
    %16 = arith.addf %13, %15 : vector<12x8xf32>
    %c0_11 = arith.constant 0 : index
    %c0_12 = arith.constant 0 : index
    %17 = vector.load %arg2[%c0_11, %c0_12] : memref<8x4xf32, #tpu.memory_space<vmem>>, vector<8x4xf32>
    %c2 = arith.constant 2 : index
    %c0_13 = arith.constant 0 : index
    %c0_14 = arith.constant 0 : index
    %18 = vector.load %arg4[%c2, %c0_13, %c0_14] : memref<3x8x8xf32, #tpu.memory_space<vmem>>, vector<1x8x8xf32>
    %19 = vector.shape_cast %18 : vector<1x8x8xf32> to vector<8x8xf32>
    %20 = vector.extract_strided_slice %19 {offsets = [0, 0], sizes = [4, 8], strides = [1, 1]} : vector<8x8xf32> to vector<4x8xf32>
    %cst_15 = arith.constant dense<0.000000e+00> : vector<8x8xf32>
    %21 = tpu.matmul %17, %20, %cst_15 {dimension_numbers = #tpu.dot_dimension_numbers<[1], [0], [0], [1], [0, 0, 1, 1], [], []>} : vector<8x4xf32>, vector<4x8xf32>, vector<8x8xf32> -> vector<8x8xf32>
    %22 = vector.extract_strided_slice %0 {offsets = [2, 0], sizes = [1, 8], strides = [1, 1]} : vector<32x8xf32> to vector<1x8xf32>
    %23 = vector.broadcast %22 : vector<1x8xf32> to vector<8x8xf32>
    %24 = arith.addf %21, %23 : vector<8x8xf32>
    %25 = vector.extract_strided_slice %0 {offsets = [3, 0], sizes = [1, 8], strides = [1, 1]} : vector<32x8xf32> to vector<1x8xf32>
    %26 = vector.extract_strided_slice %0 {offsets = [4, 0], sizes = [1, 8], strides = [1, 1]} : vector<32x8xf32> to vector<1x8xf32>
    %c0_16 = arith.constant 0 : index
    %c0_17 = arith.constant 0 : index
    %c0_18 = arith.constant 0 : index
    %27 = vector.load %arg3[%c0_16, %c0_17, %c0_18] : memref<3x16x16xf32, #tpu.memory_space<vmem>>, vector<1x16x16xf32>
    %28 = vector.shape_cast %27 : vector<1x16x16xf32> to vector<16x16xf32>
    %29 = vector.extract_strided_slice %28 {offsets = [0, 0], sizes = [12, 16], strides = [1, 1]} : vector<16x16xf32> to vector<12x16xf32>
    %30 = vector.broadcast %26 : vector<1x8xf32> to vector<12x8xf32>
    %31 = arith.mulf %16, %30 : vector<12x8xf32>
    %cst_19 = arith.constant dense<0.000000e+00> : vector<12xf32>
    %32 = vector.multi_reduction <add>, %31, %cst_19 [1] : vector<12x8xf32> to vector<12xf32>
    %33 = vector.shape_cast %32 : vector<12xf32> to vector<12x1xf32>
    %34 = vector.broadcast %25 : vector<1x8xf32> to vector<16x8xf32>
    %35 = arith.mulf %8, %34 : vector<16x8xf32>
    %cst_20 = arith.constant dense<0.000000e+00> : vector<16xf32>
    %36 = vector.multi_reduction <add>, %35, %cst_20 [1] : vector<16x8xf32> to vector<16xf32>
    %37 = vector.shape_cast %36 : vector<16xf32> to vector<16x1xf32>
    %38 = tpu.transpose %37, [1, 0] : vector<16x1xf32> -> vector<1x16xf32>
    %39 = vector.broadcast %33 : vector<12x1xf32> to vector<12x16xf32>
    %40 = vector.broadcast %38 : vector<1x16xf32> to vector<12x16xf32>
    %41 = arith.addf %39, %40 : vector<12x16xf32>
    %cst_21 = arith.constant 0.000000e+00 : f32
    %42 = vector.broadcast %cst_21 : f32 to vector<12x16xf32>
    %43 = arith.cmpf oge, %41, %42 : vector<12x16xf32>
    %cst_22 = arith.constant 2.000000e-01 : f32
    %44 = vector.broadcast %cst_22 : f32 to vector<12x16xf32>
    %45 = arith.mulf %44, %41 : vector<12x16xf32>
    %46 = arith.select %43, %41, %45 : vector<12x16xi1>, vector<12x16xf32>
    %47 = arith.addf %46, %29 : vector<12x16xf32>
    %cst_23 = arith.constant dense<0xFF800000> : vector<12xf32>
    %48 = vector.multi_reduction <maximumf>, %47, %cst_23 [1] : vector<12x16xf32> to vector<12xf32>
    %49 = vector.shape_cast %48 : vector<12xf32> to vector<12x1xf32>
    %cst_24 = arith.constant -1.000000e+29 : f32
    %50 = vector.broadcast %cst_24 : f32 to vector<12x1xf32>
    %51 = arith.cmpf olt, %49, %50 : vector<12x1xf32>
    %cst_25 = arith.constant 0.000000e+00 : f32
    %52 = vector.broadcast %cst_25 : f32 to vector<12x1xf32>
    %53 = arith.select %51, %52, %49 : vector<12x1xi1>, vector<12x1xf32>
    %54 = vector.broadcast %53 : vector<12x1xf32> to vector<12x16xf32>
    %55 = arith.subf %47, %54 : vector<12x16xf32>
    %56 = math.exp %55 : vector<12x16xf32>
    %cst_26 = arith.constant dense<0.000000e+00> : vector<12xf32>
    %57 = vector.multi_reduction <add>, %56, %cst_26 [1] : vector<12x16xf32> to vector<12xf32>
    %58 = vector.shape_cast %57 : vector<12xf32> to vector<12x1xf32>
    %cst_27 = arith.constant 0.000000e+00 : f32
    %59 = vector.broadcast %cst_27 : f32 to vector<12x1xf32>
    %60 = arith.cmpf ogt, %58, %59 : vector<12x1xf32>
    %cst_28 = arith.constant 1.000000e+00 : f32
    %61 = vector.broadcast %cst_28 : f32 to vector<12x1xf32>
    %62 = arith.select %60, %58, %61 : vector<12x1xi1>, vector<12x1xf32>
    %63 = tpu.reciprocal %62 {approx = true} : vector<12x1xf32> -> vector<12x1xf32>
    %64 = vector.broadcast %63 : vector<12x1xf32> to vector<12x16xf32>
    %65 = arith.mulf %56, %64 : vector<12x16xf32>
    %cst_29 = arith.constant dense<0.000000e+00> : vector<12x8xf32>
    %66 = tpu.matmul %65, %8, %cst_29 {dimension_numbers = #tpu.dot_dimension_numbers<[1], [0], [0], [1], [0, 0, 1, 1], [], []>} : vector<12x16xf32>, vector<16x8xf32>, vector<12x8xf32> -> vector<12x8xf32>
    %cst_30 = arith.constant 0.000000e+00 : f32
    %67 = vector.broadcast %cst_30 : f32 to vector<12x8xf32>
    %68 = arith.maximumf %66, %67 : vector<12x8xf32>
    %69 = vector.extract_strided_slice %0 {offsets = [5, 0], sizes = [1, 8], strides = [1, 1]} : vector<32x8xf32> to vector<1x8xf32>
    %70 = vector.extract_strided_slice %0 {offsets = [6, 0], sizes = [1, 8], strides = [1, 1]} : vector<32x8xf32> to vector<1x8xf32>
    %c1_31 = arith.constant 1 : index
    %c0_32 = arith.constant 0 : index
    %c0_33 = arith.constant 0 : index
    %71 = vector.load %arg3[%c1_31, %c0_32, %c0_33] : memref<3x16x16xf32, #tpu.memory_space<vmem>>, vector<1x16x16xf32>
    %72 = vector.shape_cast %71 : vector<1x16x16xf32> to vector<16x16xf32>
    %73 = vector.extract_strided_slice %72 {offsets = [0, 0], sizes = [16, 12], strides = [1, 1]} : vector<16x16xf32> to vector<16x12xf32>
    %74 = vector.broadcast %70 : vector<1x8xf32> to vector<16x8xf32>
    %75 = arith.mulf %8, %74 : vector<16x8xf32>
    %cst_34 = arith.constant dense<0.000000e+00> : vector<16xf32>
    %76 = vector.multi_reduction <add>, %75, %cst_34 [1] : vector<16x8xf32> to vector<16xf32>
    %77 = vector.shape_cast %76 : vector<16xf32> to vector<16x1xf32>
    %78 = vector.broadcast %69 : vector<1x8xf32> to vector<12x8xf32>
    %79 = arith.mulf %16, %78 : vector<12x8xf32>
    %cst_35 = arith.constant dense<0.000000e+00> : vector<12xf32>
    %80 = vector.multi_reduction <add>, %79, %cst_35 [1] : vector<12x8xf32> to vector<12xf32>
    %81 = vector.shape_cast %80 : vector<12xf32> to vector<12x1xf32>
    %82 = tpu.transpose %81, [1, 0] : vector<12x1xf32> -> vector<1x12xf32>
    %83 = vector.broadcast %77 : vector<16x1xf32> to vector<16x12xf32>
    %84 = vector.broadcast %82 : vector<1x12xf32> to vector<16x12xf32>
    %85 = arith.addf %83, %84 : vector<16x12xf32>
    %cst_36 = arith.constant 0.000000e+00 : f32
    %86 = vector.broadcast %cst_36 : f32 to vector<16x12xf32>
    %87 = arith.cmpf oge, %85, %86 : vector<16x12xf32>
    %cst_37 = arith.constant 2.000000e-01 : f32
    %88 = vector.broadcast %cst_37 : f32 to vector<16x12xf32>
    %89 = arith.mulf %88, %85 : vector<16x12xf32>
    %90 = arith.select %87, %85, %89 : vector<16x12xi1>, vector<16x12xf32>
    %91 = arith.addf %90, %73 : vector<16x12xf32>
    %cst_38 = arith.constant dense<0xFF800000> : vector<16xf32>
    %92 = vector.multi_reduction <maximumf>, %91, %cst_38 [1] : vector<16x12xf32> to vector<16xf32>
    %93 = vector.shape_cast %92 : vector<16xf32> to vector<16x1xf32>
    %cst_39 = arith.constant -1.000000e+29 : f32
    %94 = vector.broadcast %cst_39 : f32 to vector<16x1xf32>
    %95 = arith.cmpf olt, %93, %94 : vector<16x1xf32>
    %cst_40 = arith.constant 0.000000e+00 : f32
    %96 = vector.broadcast %cst_40 : f32 to vector<16x1xf32>
    %97 = arith.select %95, %96, %93 : vector<16x1xi1>, vector<16x1xf32>
    %98 = vector.broadcast %97 : vector<16x1xf32> to vector<16x12xf32>
    %99 = arith.subf %91, %98 : vector<16x12xf32>
    %100 = math.exp %99 : vector<16x12xf32>
    %cst_41 = arith.constant dense<0.000000e+00> : vector<16xf32>
    %101 = vector.multi_reduction <add>, %100, %cst_41 [1] : vector<16x12xf32> to vector<16xf32>
    %102 = vector.shape_cast %101 : vector<16xf32> to vector<16x1xf32>
    %cst_42 = arith.constant 0.000000e+00 : f32
    %103 = vector.broadcast %cst_42 : f32 to vector<16x1xf32>
    %104 = arith.cmpf ogt, %102, %103 : vector<16x1xf32>
    %cst_43 = arith.constant 1.000000e+00 : f32
    %105 = vector.broadcast %cst_43 : f32 to vector<16x1xf32>
    %106 = arith.select %104, %102, %105 : vector<16x1xi1>, vector<16x1xf32>
    %107 = tpu.reciprocal %106 {approx = true} : vector<16x1xf32> -> vector<16x1xf32>
    %108 = vector.broadcast %107 : vector<16x1xf32> to vector<16x12xf32>
    %109 = arith.mulf %100, %108 : vector<16x12xf32>
    %cst_44 = arith.constant dense<0.000000e+00> : vector<16x8xf32>
    %110 = tpu.matmul %109, %16, %cst_44 {dimension_numbers = #tpu.dot_dimension_numbers<[1], [0], [0], [1], [0, 0, 1, 1], [], []>} : vector<16x12xf32>, vector<12x8xf32>, vector<16x8xf32> -> vector<16x8xf32>
    %cst_45 = arith.constant 0.000000e+00 : f32
    %111 = vector.broadcast %cst_45 : f32 to vector<16x8xf32>
    %112 = arith.maximumf %110, %111 : vector<16x8xf32>
    %113 = vector.extract_strided_slice %0 {offsets = [7, 0], sizes = [1, 8], strides = [1, 1]} : vector<32x8xf32> to vector<1x8xf32>
    %114 = vector.extract_strided_slice %0 {offsets = [8, 0], sizes = [1, 8], strides = [1, 1]} : vector<32x8xf32> to vector<1x8xf32>
    %c2_46 = arith.constant 2 : index
    %c0_47 = arith.constant 0 : index
    %c0_48 = arith.constant 0 : index
    %115 = vector.load %arg3[%c2_46, %c0_47, %c0_48] : memref<3x16x16xf32, #tpu.memory_space<vmem>>, vector<1x16x16xf32>
    %116 = vector.shape_cast %115 : vector<1x16x16xf32> to vector<16x16xf32>
    %117 = vector.extract_strided_slice %116 {offsets = [0, 0], sizes = [16, 8], strides = [1, 1]} : vector<16x16xf32> to vector<16x8xf32>
    %118 = vector.broadcast %114 : vector<1x8xf32> to vector<16x8xf32>
    %119 = arith.mulf %8, %118 : vector<16x8xf32>
    %cst_49 = arith.constant dense<0.000000e+00> : vector<16xf32>
    %120 = vector.multi_reduction <add>, %119, %cst_49 [1] : vector<16x8xf32> to vector<16xf32>
    %121 = vector.shape_cast %120 : vector<16xf32> to vector<16x1xf32>
    %122 = vector.broadcast %113 : vector<1x8xf32> to vector<8x8xf32>
    %123 = arith.mulf %24, %122 : vector<8x8xf32>
    %cst_50 = arith.constant dense<0.000000e+00> : vector<8xf32>
    %124 = vector.multi_reduction <add>, %123, %cst_50 [1] : vector<8x8xf32> to vector<8xf32>
    %125 = vector.shape_cast %124 : vector<8xf32> to vector<8x1xf32>
    %126 = tpu.transpose %125, [1, 0] : vector<8x1xf32> -> vector<1x8xf32>
    %127 = vector.broadcast %121 : vector<16x1xf32> to vector<16x8xf32>
    %128 = vector.broadcast %126 : vector<1x8xf32> to vector<16x8xf32>
    %129 = arith.addf %127, %128 : vector<16x8xf32>
    %cst_51 = arith.constant 0.000000e+00 : f32
    %130 = vector.broadcast %cst_51 : f32 to vector<16x8xf32>
    %131 = arith.cmpf oge, %129, %130 : vector<16x8xf32>
    %cst_52 = arith.constant 2.000000e-01 : f32
    %132 = vector.broadcast %cst_52 : f32 to vector<16x8xf32>
    %133 = arith.mulf %132, %129 : vector<16x8xf32>
    %134 = arith.select %131, %129, %133 : vector<16x8xi1>, vector<16x8xf32>
    %135 = arith.addf %134, %117 : vector<16x8xf32>
    %cst_53 = arith.constant dense<0xFF800000> : vector<16xf32>
    %136 = vector.multi_reduction <maximumf>, %135, %cst_53 [1] : vector<16x8xf32> to vector<16xf32>
    %137 = vector.shape_cast %136 : vector<16xf32> to vector<16x1xf32>
    %cst_54 = arith.constant -1.000000e+29 : f32
    %138 = vector.broadcast %cst_54 : f32 to vector<16x1xf32>
    %139 = arith.cmpf olt, %137, %138 : vector<16x1xf32>
    %cst_55 = arith.constant 0.000000e+00 : f32
    %140 = vector.broadcast %cst_55 : f32 to vector<16x1xf32>
    %141 = arith.select %139, %140, %137 : vector<16x1xi1>, vector<16x1xf32>
    %142 = vector.broadcast %141 : vector<16x1xf32> to vector<16x8xf32>
    %143 = arith.subf %135, %142 : vector<16x8xf32>
    %144 = math.exp %143 : vector<16x8xf32>
    %cst_56 = arith.constant dense<0.000000e+00> : vector<16xf32>
    %145 = vector.multi_reduction <add>, %144, %cst_56 [1] : vector<16x8xf32> to vector<16xf32>
    %146 = vector.shape_cast %145 : vector<16xf32> to vector<16x1xf32>
    %cst_57 = arith.constant 0.000000e+00 : f32
    %147 = vector.broadcast %cst_57 : f32 to vector<16x1xf32>
    %148 = arith.cmpf ogt, %146, %147 : vector<16x1xf32>
    %cst_58 = arith.constant 1.000000e+00 : f32
    %149 = vector.broadcast %cst_58 : f32 to vector<16x1xf32>
    %150 = arith.select %148, %146, %149 : vector<16x1xi1>, vector<16x1xf32>
    %151 = tpu.reciprocal %150 {approx = true} : vector<16x1xf32> -> vector<16x1xf32>
    %152 = vector.broadcast %151 : vector<16x1xf32> to vector<16x8xf32>
    %153 = arith.mulf %144, %152 : vector<16x8xf32>
    %cst_59 = arith.constant dense<0.000000e+00> : vector<16x8xf32>
    %154 = tpu.matmul %153, %24, %cst_59 {dimension_numbers = #tpu.dot_dimension_numbers<[1], [0], [0], [1], [0, 0, 1, 1], [], []>} : vector<16x8xf32>, vector<8x8xf32>, vector<16x8xf32> -> vector<16x8xf32>
    %cst_60 = arith.constant 0.000000e+00 : f32
    %155 = vector.broadcast %cst_60 : f32 to vector<16x8xf32>
    %156 = arith.maximumf %154, %155 : vector<16x8xf32>
    %157 = vector.extract_strided_slice %0 {offsets = [9, 0], sizes = [8, 8], strides = [1, 1]} : vector<32x8xf32> to vector<8x8xf32>
    %158 = vector.extract_strided_slice %0 {offsets = [17, 0], sizes = [1, 8], strides = [1, 1]} : vector<32x8xf32> to vector<1x8xf32>
    %159 = vector.extract_strided_slice %0 {offsets = [18, 0], sizes = [1, 8], strides = [1, 1]} : vector<32x8xf32> to vector<1x8xf32>
    %cst_61 = arith.constant dense<0.000000e+00> : vector<16x8xf32>
    %160 = tpu.matmul %112, %157, %cst_61 {dimension_numbers = #tpu.dot_dimension_numbers<[1], [0], [0], [1], [0, 0, 1, 1], [], []>} : vector<16x8xf32>, vector<8x8xf32>, vector<16x8xf32> -> vector<16x8xf32>
    %161 = vector.broadcast %158 : vector<1x8xf32> to vector<16x8xf32>
    %162 = arith.addf %160, %161 : vector<16x8xf32>
    %163 = math.tanh %162 : vector<16x8xf32>
    %cst_62 = arith.constant dense<0.000000e+00> : vector<8xf32>
    %164 = vector.multi_reduction <add>, %163, %cst_62 [0] : vector<16x8xf32> to vector<8xf32>
    %165 = vector.shape_cast %164 : vector<8xf32> to vector<1x8xf32>
    %cst_63 = arith.constant 6.250000e-02 : f32
    %166 = vector.broadcast %cst_63 : f32 to vector<1x8xf32>
    %167 = arith.mulf %165, %166 : vector<1x8xf32>
    %168 = arith.mulf %159, %167 : vector<1x8xf32>
    %cst_64 = arith.constant dense<0.000000e+00> : vector<1xf32>
    %169 = vector.multi_reduction <add>, %168, %cst_64 [1] : vector<1x8xf32> to vector<1xf32>
    %170 = vector.shape_cast %169 : vector<1xf32> to vector<1x1xf32>
    %cst_65 = arith.constant dense<0.000000e+00> : vector<16x8xf32>
    %171 = tpu.matmul %156, %157, %cst_65 {dimension_numbers = #tpu.dot_dimension_numbers<[1], [0], [0], [1], [0, 0, 1, 1], [], []>} : vector<16x8xf32>, vector<8x8xf32>, vector<16x8xf32> -> vector<16x8xf32>
    %172 = vector.broadcast %158 : vector<1x8xf32> to vector<16x8xf32>
    %173 = arith.addf %171, %172 : vector<16x8xf32>
    %174 = math.tanh %173 : vector<16x8xf32>
    %cst_66 = arith.constant dense<0.000000e+00> : vector<8xf32>
    %175 = vector.multi_reduction <add>, %174, %cst_66 [0] : vector<16x8xf32> to vector<8xf32>
    %176 = vector.shape_cast %175 : vector<8xf32> to vector<1x8xf32>
    %cst_67 = arith.constant 6.250000e-02 : f32
    %177 = vector.broadcast %cst_67 : f32 to vector<1x8xf32>
    %178 = arith.mulf %176, %177 : vector<1x8xf32>
    %179 = arith.mulf %159, %178 : vector<1x8xf32>
    %cst_68 = arith.constant dense<0.000000e+00> : vector<1xf32>
    %180 = vector.multi_reduction <add>, %179, %cst_68 [1] : vector<1x8xf32> to vector<1xf32>
    %181 = vector.shape_cast %180 : vector<1xf32> to vector<1x1xf32>
    %182 = arith.maximumf %170, %181 : vector<1x1xf32>
    %183 = arith.subf %170, %182 : vector<1x1xf32>
    %184 = math.exp %183 : vector<1x1xf32>
    %185 = arith.subf %181, %182 : vector<1x1xf32>
    %186 = math.exp %185 : vector<1x1xf32>
    %187 = arith.addf %184, %186 : vector<1x1xf32>
    %cst_69 = arith.constant 1.000000e+00 : f32
    %188 = vector.broadcast %cst_69 : f32 to vector<1x1xf32>
    %189 = arith.divf %188, %187 : vector<1x1xf32>
    %190 = arith.mulf %184, %189 : vector<1x1xf32>
    %191 = vector.broadcast %190 : vector<1x1xf32> to vector<16x8xf32>
    %192 = arith.mulf %191, %112 : vector<16x8xf32>
    %193 = arith.mulf %186, %189 : vector<1x1xf32>
    %194 = vector.broadcast %193 : vector<1x1xf32> to vector<16x8xf32>
    %195 = arith.mulf %194, %156 : vector<16x8xf32>
    %196 = arith.addf %192, %195 : vector<16x8xf32>
    %197 = vector.extract_strided_slice %0 {offsets = [19, 0], sizes = [8, 8], strides = [1, 1]} : vector<32x8xf32> to vector<8x8xf32>
    %198 = vector.extract_strided_slice %0 {offsets = [27, 0], sizes = [1, 8], strides = [1, 1]} : vector<32x8xf32> to vector<1x8xf32>
    %cst_70 = arith.constant dense<0.000000e+00> : vector<16x8xf32>
    %199 = tpu.matmul %196, %197, %cst_70 {dimension_numbers = #tpu.dot_dimension_numbers<[1], [0], [0], [1], [0, 0, 1, 1], [], []>} : vector<16x8xf32>, vector<8x8xf32>, vector<16x8xf32> -> vector<16x8xf32>
    %200 = vector.broadcast %198 : vector<1x8xf32> to vector<16x8xf32>
    %201 = arith.addf %199, %200 : vector<16x8xf32>
    %202 = math.absf %201 : vector<16x8xf32>
    %cst_71 = arith.constant 0.000000e+00 : f32
    %203 = vector.broadcast %cst_71 : f32 to vector<16x8xf32>
    %204 = arith.subf %203, %202 : vector<16x8xf32>
    %205 = math.exp %204 : vector<16x8xf32>
    %cst_72 = arith.constant 0.000000e+00 : f32
    %206 = vector.broadcast %cst_72 : f32 to vector<16x8xf32>
    %207 = arith.cmpf oge, %201, %206 : vector<16x8xf32>
    %cst_73 = arith.constant 1.000000e+00 : f32
    %208 = vector.broadcast %cst_73 : f32 to vector<16x8xf32>
    %209 = arith.addf %208, %205 : vector<16x8xf32>
    %cst_74 = arith.constant 1.000000e+00 : f32
    %210 = vector.broadcast %cst_74 : f32 to vector<16x8xf32>
    %211 = arith.divf %210, %209 : vector<16x8xf32>
    %cst_75 = arith.constant 1.000000e+00 : f32
    %212 = vector.broadcast %cst_75 : f32 to vector<16x8xf32>
    %213 = arith.addf %212, %205 : vector<16x8xf32>
    %214 = arith.divf %205, %213 : vector<16x8xf32>
    %215 = arith.select %207, %211, %214 : vector<16x8xi1>, vector<16x8xf32>
    %c0_76 = arith.constant 0 : index
    %c0_77 = arith.constant 0 : index
    %216 = vector.load %arg6[%c0_76, %c0_77] : memref<16x8xf32, #tpu.memory_space<vmem>>, vector<16x8xf32>
    tpu.vector_store %arg6[%c0_76, %c0_77], %215 {strides = array<i32>} : memref<16x8xf32, #tpu.memory_space<vmem>>, vector<16x8xf32>,
    %cst_78 = arith.constant dense<0.000000e+00> : vector<12x8xf32>
    %217 = tpu.matmul %68, %197, %cst_78 {dimension_numbers = #tpu.dot_dimension_numbers<[1], [0], [0], [1], [0, 0, 1, 1], [], []>} : vector<12x8xf32>, vector<8x8xf32>, vector<12x8xf32> -> vector<12x8xf32>
    %218 = vector.broadcast %198 : vector<1x8xf32> to vector<12x8xf32>
    %219 = arith.addf %217, %218 : vector<12x8xf32>
    %220 = math.absf %219 : vector<12x8xf32>
    %cst_79 = arith.constant 0.000000e+00 : f32
    %221 = vector.broadcast %cst_79 : f32 to vector<12x8xf32>
    %222 = arith.subf %221, %220 : vector<12x8xf32>
    %223 = math.exp %222 : vector<12x8xf32>
    %cst_80 = arith.constant 0.000000e+00 : f32
    %224 = vector.broadcast %cst_80 : f32 to vector<12x8xf32>
    %225 = arith.cmpf oge, %219, %224 : vector<12x8xf32>
    %cst_81 = arith.constant 1.000000e+00 : f32
    %226 = vector.broadcast %cst_81 : f32 to vector<12x8xf32>
    %227 = arith.addf %226, %223 : vector<12x8xf32>
    %cst_82 = arith.constant 1.000000e+00 : f32
    %228 = vector.broadcast %cst_82 : f32 to vector<12x8xf32>
    %229 = arith.divf %228, %227 : vector<12x8xf32>
    %cst_83 = arith.constant 1.000000e+00 : f32
    %230 = vector.broadcast %cst_83 : f32 to vector<12x8xf32>
    %231 = arith.addf %230, %223 : vector<12x8xf32>
    %232 = arith.divf %223, %231 : vector<12x8xf32>
    %233 = arith.select %225, %229, %232 : vector<12x8xi1>, vector<12x8xf32>
    %c0_84 = arith.constant 0 : index
    %c0_85 = arith.constant 0 : index
    %234 = vector.load %arg7[%c0_84, %c0_85] : memref<12x8xf32, #tpu.memory_space<vmem>>, vector<12x8xf32>
    tpu.vector_store %arg7[%c0_84, %c0_85], %233 {strides = array<i32>} : memref<12x8xf32, #tpu.memory_space<vmem>>, vector<12x8xf32>,
    return
  }
}

</mosaic_0001>

<llo_original>
// kernel: han1layer_forward.1
$region0: #{han1layer_forward.1}
  #allocation0 [shape = 'u32[]', space=smem, size = 0x4, offset = 0x4, fixed_abs, tag = 'smem constant byte address 0x4 - core index']
  #allocation1 [shape = 'u32[144,128]{1,0:T(1,128)}', space=vmem, size = 0x12000, scoped, tag = 'internal scratch']
  %s0 = inlined_call_operand.vmem [shape: f32[16,6], index: 0, kind: input, shape index: {}]
  %s1 = inlined_call_operand.vmem [shape: f32[12,5], index: 1, kind: input, shape index: {}]
  %s2 = inlined_call_operand.vmem [shape: f32[8,4], index: 2, kind: input, shape index: {}]
  %s3 = inlined_call_operand.vmem [shape: f32[3,16,16], index: 3, kind: input, shape index: {}]
  %s4 = inlined_call_operand.vmem [shape: f32[3,8,8], index: 4, kind: input, shape index: {}]
  %s5 = inlined_call_operand.vmem [shape: f32[32,8], index: 5, kind: input, shape index: {}]
  %s6 = inlined_call_operand.vmem [shape: f32[16,8], index: 6, kind: output, shape index: {0}]
  %s7 = inlined_call_operand.vmem [shape: f32[12,8], index: 7, kind: output, shape index: {1}]
  %8 = xla_tuple %s6, %s7
  %s9 = sld [smem:[#allocation0]]
  $region42: #{han1layer_forward.1} parent=0
    _
  %s11 = ssub.s32 1, %s9
  %s12 = scalar_select 0, %s11, %s9
  // Predicated region
  $region2: #{han1layer_forward.1} parent=0 // pred_check
    _
  $region3: #{han1layer_forward.1} parent=0 // pred_check_branch
    %14 = sbr.rel (0) target = $region5
  $region4: #{han1layer_forward.1} parent=0 // pred_region
    _
  $region5: #{han1layer_forward.1} parent=0 // pred_fallthru
    _
  // Predicated region
  $region6: #{han1layer_forward.1} parent=0 // pred_check
    _
  $region7: #{han1layer_forward.1} parent=0 // pred_check_branch
    %16 = sbr.rel (0) target = $region9
  $region8: #{han1layer_forward.1} parent=0 // pred_region
    _
  $region9: #{han1layer_forward.1} parent=0 // pred_fallthru
    _
  // Predicated region
  $region10: #{han1layer_forward.1} parent=0 // pred_check
    _
  $region11: #{han1layer_forward.1} parent=0 // pred_check_branch
    %18 = sbr.rel (0) target = $region13
  $region12: #{han1layer_forward.1} parent=0 // pred_region
    _
  $region13: #{han1layer_forward.1} parent=0 // pred_fallthru
    _
  // Predicated region
  $region14: #{han1layer_forward.1} parent=0 // pred_check
    _
  $region15: #{han1layer_forward.1} parent=0 // pred_check_branch
    %20 = sbr.rel (0) target = $region17
  $region16: #{han1layer_forward.1} parent=0 // pred_region
    _
  $region17: #{han1layer_forward.1} parent=0 // pred_fallthru
    _
  // Predicated region
  $region18: #{han1layer_forward.1} parent=0 // pred_check
    _
  $region19: #{han1layer_forward.1} parent=0 // pred_check_branch
    %22 = sbr.rel (0) target = $region21
  $region20: #{han1layer_forward.1} parent=0 // pred_region
    _
  $region21: #{han1layer_forward.1} parent=0 // pred_fallthru
    _
  // Predicated region
  $region22: #{han1layer_forward.1} parent=0 // pred_check
    _
  $region23: #{han1layer_forward.1} parent=0 // pred_check_branch
    %24 = sbr.rel (0) target = $region25
  $region24: #{han1layer_forward.1} parent=0 // pred_region
    _
  $region25: #{han1layer_forward.1} parent=0 // pred_fallthru
    _
  %v25 = vld [vmem:[%s5] sm:$0xff]
  %v26 = vld [vmem:[%s5 + $0x8] sm:$0xff]
  %v27 = vld [vmem:[%s5 + $0x10] sm:$0xff]
  %v28 = vld [vmem:[%s5 + $0x18] sm:$0xff]
  %v29 = vld [vmem:[%s0] sm:$0xff]
  %v30 = vld [vmem:[%s0 + $0x8] sm:$0xff]
  %v31 = vld [vmem:[%s4] sm:$0xff]
  %v32 = vlaneseq
  %v33 = vshrl.u32 %v32, 7
  %v34 = vsub.s32 0, %v33
  %v35 = vrot.slane %v25, %v34
  %vm36 = vcmask 48128
  %v38 = vsel %vm36, %v29, 0
  %v41 = vsel %vm36, %v30, 0
  %vm43 = vcmask 1045504
  %v45 = vsel %vm43, %v31, 0
  %47 = vmatprep.subr.mxu0 0.0
  %48 = vmatpush1.msra.mxu0 %v45
  %49 = vmatprep.subr.mxu0 0.0
  %50 = vmatpush1.msra.mxu0 0.0
  %51 = vmatprep.subr.mxu0 0.0
  %52 = vmatpush1.msra.mxu0 0.0
  %53 = vmatprep.subr.mxu0 0.0
  %54 = vmatpush1.msra.mxu0 0.0
  %55 = vmatprep.subr.mxu0 0.0
  %56 = vmatpush1.msra.mxu0 0.0
  %57 = vmatprep.subr.mxu0 0.0
  %58 = vmatpush1.msra.mxu0 0.0
  %59 = vmatprep.subr.mxu0 0.0
  %60 = vmatpush1.msra.mxu0 0.0
  %61 = vmatprep.subr.mxu0 0.0
  %62 = vmatpush1.msra.mxu0 0.0
  %63 = vmatprep.subr.mxu0 0.0
  %64 = vmatpush1.msra.mxu0 0.0
  %65 = vmatprep.subr.mxu0 0.0
  %66 = vmatpush1.msra.mxu0 0.0
  %67 = vmatprep.subr.mxu0 0.0
  %68 = vmatpush1.msra.mxu0 0.0
  %69 = vmatprep.subr.mxu0 0.0
  %70 = vmatpush1.msra.mxu0 0.0
  %71 = vmatprep.subr.mxu0 0.0
  %72 = vmatpush1.msra.mxu0 0.0
  %73 = vmatprep.subr.mxu0 0.0
  %74 = vmatpush1.msra.mxu0 0.0
  %75 = vmatprep.subr.mxu0 0.0
  %76 = vmatpush1.msra.mxu0 0.0
  %77 = vmatprep.subr.mxu0 0.0
  %78 = vmatpush1.msra.mxu0 0.0
  %79 = vmatprep.subr.mxu0 0.0
  %80 = vmatpush1.msra.mxu0 0.0
  %81 = vmatprep.subr.mxu0 0.0
  %82 = vmatpush1.msra.mxu0 0.0
  %83 = vmatprep.subr.mxu0 0.0
  %84 = vmatpush1.msra.mxu0 0.0
  %85 = vmatprep.subr.mxu0 0.0
  %86 = vmatpush1.msra.mxu0 0.0
  %87 = vmatprep.subr.mxu0 0.0
  %88 = vmatpush1.msra.mxu0 0.0
  %89 = vmatprep.subr.mxu0 0.0
  %90 = vmatpush1.msra.mxu0 0.0
  %91 = vmatprep.subr.mxu0 0.0
  %92 = vmatpush1.msra.mxu0 0.0
  %93 = vmatprep.subr.mxu0 0.0
  %94 = vmatpush1.msra.mxu0 0.0
  %95 = vmatprep.subr.mxu0 0.0
  %96 = vmatpush1.msra.mxu0 0.0
  %97 = vmatprep.subr.mxu0 0.0
  %98 = vmatpush1.msra.mxu0 0.0
  %99 = vmatprep.subr.mxu0 0.0
  %100 = vmatpush1.msra.mxu0 0.0
  %101 = vmatprep.subr.mxu0 0.0
  %102 = vmatpush1.msra.mxu0 0.0
  %103 = vmatprep.subr.mxu0 0.0
  %104 = vmatpush1.msra.mxu0 0.0
  %105 = vmatprep.subr.mxu0 0.0
  %106 = vmatpush1.msra.mxu0 0.0
  %107 = vmatprep.subr.mxu0 0.0
  %108 = vmatpush1.msra.mxu0 0.0
  %109 = vmatprep.subr.mxu0 0.0
  %110 = vmatpush1.msra.mxu0 0.0
  %111 = vmatprep.mubr.f32.mxu0 0.0
  %112 = vmatmul.mubr.f32.gmra.mrb[0].mxu0 %v38
  %v113 = vpop.f32.mrb[0].mxu0
  %v114 = vadd.f32 %v35, %v113
  %v115 = vpop.f32.mrb[0].mxu0
  %116 = vmatprep.mubr.f32.mxu0 0.0
  %117 = vmatmul.mubr.f32.gmra.mrb[0].mxu0 %v41
  %v118 = vpop.f32.mrb[0].mxu0
  %v119 = vadd.f32 %v35, %v118
  %v120 = vpop.f32.mrb[0].mxu0
  %121 = vdwg.mxu0
  %v122 = vld [vmem:[%s1] sm:$0xff]
  %v123 = vld [vmem:[%s1 + $0x8] sm:$0xf]
  %s124 = scalar_lea.vmem %s4, 8
  %v125 = vld [vmem:[%s124] sm:$0xff]
  %v126 = vlaneseq
  %v127 = vshrl.u32 %v126, 7
  %v128 = vsub.s32 1, %v127
  %v129 = vrot.slane %v25, %v128
  %vm130 = vcmask 39936
  %v132 = vsel %vm130, %v122, 0
  %v135 = vsel %vm130, %v123, 0
  %vm137 = vcmask 1044480
  %v139 = vsel %vm137, %v125, 0
  %141 = vmatprep.subr.mxu0 0.0
  %142 = vmatpush1.msra.mxu0 %v139
  %143 = vmatprep.subr.mxu0 0.0
  %144 = vmatpush1.msra.mxu0 0.0
  %145 = vmatprep.subr.mxu0 0.0
  %146 = vmatpush1.msra.mxu0 0.0
  %147 = vmatprep.subr.mxu0 0.0
  %148 = vmatpush1.msra.mxu0 0.0
  %149 = vmatprep.subr.mxu0 0.0
  %150 = vmatpush1.msra.mxu0 0.0
  %151 = vmatprep.subr.mxu0 0.0
  %152 = vmatpush1.msra.mxu0 0.0
  %153 = vmatprep.subr.mxu0 0.0
  %154 = vmatpush1.msra.mxu0 0.0
  %155 = vmatprep.subr.mxu0 0.0
  %156 = vmatpush1.msra.mxu0 0.0
  %157 = vmatprep.subr.mxu0 0.0
  %158 = vmatpush1.msra.mxu0 0.0
  %159 = vmatprep.subr.mxu0 0.0
  %160 = vmatpush1.msra.mxu0 0.0
  %161 = vmatprep.subr.mxu0 0.0
  %162 = vmatpush1.msra.mxu0 0.0
  %163 = vmatprep.subr.mxu0 0.0
  %164 = vmatpush1.msra.mxu0 0.0
  %165 = vmatprep.subr.mxu0 0.0
  %166 = vmatpush1.msra.mxu0 0.0
  %167 = vmatprep.subr.mxu0 0.0
  %168 = vmatpush1.msra.mxu0 0.0
  %169 = vmatprep.subr.mxu0 0.0
  %170 = vmatpush1.msra.mxu0 0.0
  %171 = vmatprep.subr.mxu0 0.0
  %172 = vmatpush1.msra.mxu0 0.0
  %173 = vmatprep.subr.mxu0 0.0
  %174 = vmatpush1.msra.mxu0 0.0
  %175 = vmatprep.subr.mxu0 0.0
  %176 = vmatpush1.msra.mxu0 0.0
  %177 = vmatprep.subr.mxu0 0.0
  %178 = vmatpush1.msra.mxu0 0.0
  %179 = vmatprep.subr.mxu0 0.0
  %180 = vmatpush1.msra.mxu0 0.0
  %181 = vmatprep.subr.mxu0 0.0
  %182 = vmatpush1.msra.mxu0 0.0
  %183 = vmatprep.subr.mxu0 0.0
  %184 = vmatpush1.msra.mxu0 0.0
  %185 = vmatprep.subr.mxu0 0.0
  %186 = vmatpush1.msra.mxu0 0.0
  %187 = vmatprep.subr.mxu0 0.0
  %188 = vmatpush1.msra.mxu0 0.0
  %189 = vmatprep.subr.mxu0 0.0
  %190 = vmatpush1.msra.mxu0 0.0
  %191 = vmatprep.subr.mxu0 0.0
  %192 = vmatpush1.msra.mxu0 0.0
  %193 = vmatprep.subr.mxu0 0.0
  %194 = vmatpush1.msra.mxu0 0.0
  %195 = vmatprep.subr.mxu0 0.0
  %196 = vmatpush1.msra.mxu0 0.0
  %197 = vmatprep.subr.mxu0 0.0
  %198 = vmatpush1.msra.mxu0 0.0
  %199 = vmatprep.subr.mxu0 0.0
  %200 = vmatpush1.msra.mxu0 0.0
  %201 = vmatprep.subr.mxu0 0.0
  %202 = vmatpush1.msra.mxu0 0.0
  %203 = vmatprep.subr.mxu0 0.0
  %204 = vmatpush1.msra.mxu0 0.0
  %205 = vmatprep.mubr.f32.mxu0 0.0
  %206 = vmatmul.mubr.f32.gmra.mrb[0].mxu0 %v132
  %v207 = vpop.f32.mrb[0].mxu0
  %v208 = vadd.f32 %v129, %v207
  %v209 = vpop.f32.mrb[0].mxu0
  %210 = vmatprep.mubr.f32.mxu0 0.0
  %211 = vmatmul.mubr.f32.gmra.mrb[0].mxu0 %v135
  %v212 = vpop.f32.mrb[0].mxu0
  %v213 = vadd.f32 %v129, %v212
  %v214 = vpop.f32.mrb[0].mxu0
  %215 = vdwg.mxu0
  %v216 = vld [vmem:[%s2] sm:$0xff]
  %s217 = scalar_lea.vmem %s4, 16
  %v218 = vld [vmem:[%s217] sm:$0xff]
  %v219 = vlaneseq
  %v220 = vshrl.u32 %v219, 7
  %v221 = vsub.s32 2, %v220
  %v222 = vrot.slane %v25, %v221
  %vm223 = vcmask 31744
  %v225 = vsel %vm223, %v216, 0
  %vm227 = vcmask 1043456
  %v229 = vsel %vm227, %v218, 0
  %231 = vmatprep.subr.mxu0 0.0
  %232 = vmatpush1.msra.mxu0 %v229
  %233 = vmatprep.subr.mxu0 0.0
  %234 = vmatpush1.msra.mxu0 0.0
  %235 = vmatprep.subr.mxu0 0.0
  %236 = vmatpush1.msra.mxu0 0.0
  %237 = vmatprep.subr.mxu0 0.0
  %238 = vmatpush1.msra.mxu0 0.0
  %239 = vmatprep.subr.mxu0 0.0
  %240 = vmatpush1.msra.mxu0 0.0
  %241 = vmatprep.subr.mxu0 0.0
  %242 = vmatpush1.msra.mxu0 0.0
  %243 = vmatprep.subr.mxu0 0.0
  %244 = vmatpush1.msra.mxu0 0.0
  %245 = vmatprep.subr.mxu0 0.0
  %246 = vmatpush1.msra.mxu0 0.0
  %247 = vmatprep.subr.mxu0 0.0
  %248 = vmatpush1.msra.mxu0 0.0
  %249 = vmatprep.subr.mxu0 0.0
  %250 = vmatpush1.msra.mxu0 0.0
  %251 = vmatprep.subr.mxu0 0.0
  %252 = vmatpush1.msra.mxu0 0.0
  %253 = vmatprep.subr.mxu0 0.0
  %254 = vmatpush1.msra.mxu0 0.0
  %255 = vmatprep.subr.mxu0 0.0
  %256 = vmatpush1.msra.mxu0 0.0
  %257 = vmatprep.subr.mxu0 0.0
  %258 = vmatpush1.msra.mxu0 0.0
  %259 = vmatprep.subr.mxu0 0.0
  %260 = vmatpush1.msra.mxu0 0.0
  %261 = vmatprep.subr.mxu0 0.0
  %262 = vmatpush1.msra.mxu0 0.0
  %263 = vmatprep.subr.mxu0 0.0
  %264 = vmatpush1.msra.mxu0 0.0
  %265 = vmatprep.subr.mxu0 0.0
  %266 = vmatpush1.msra.mxu0 0.0
  %267 = vmatprep.subr.mxu0 0.0
  %268 = vmatpush1.msra.mxu0 0.0
  %269 = vmatprep.subr.mxu0 0.0
  %270 = vmatpush1.msra.mxu0 0.0
  %271 = vmatprep.subr.mxu0 0.0
  %272 = vmatpush1.msra.mxu0 0.0
  %273 = vmatprep.subr.mxu0 0.0
  %274 = vmatpush1.msra.mxu0 0.0
  %275 = vmatprep.subr.mxu0 0.0
  %276 = vmatpush1.msra.mxu0 0.0
  %277 = vmatprep.subr.mxu0 0.0
  %278 = vmatpush1.msra.mxu0 0.0
  %279 = vmatprep.subr.mxu0 0.0
  %280 = vmatpush1.msra.mxu0 0.0
  %281 = vmatprep.subr.mxu0 0.0
  %282 = vmatpush1.msra.mxu0 0.0
  %283 = vmatprep.subr.mxu0 0.0
  %284 = vmatpush1.msra.mxu0 0.0
  %285 = vmatprep.subr.mxu0 0.0
  %286 = vmatpush1.msra.mxu0 0.0
  %287 = vmatprep.subr.mxu0 0.0
  %288 = vmatpush1.msra.mxu0 0.0
  %289 = vmatprep.subr.mxu0 0.0
  %290 = vmatpush1.msra.mxu0 0.0
  %291 = vmatprep.subr.mxu0 0.0
  %292 = vmatpush1.msra.mxu0 0.0
  %293 = vmatprep.subr.mxu0 0.0
  %294 = vmatpush1.msra.mxu0 0.0
  %295 = vmatprep.mubr.f32.mxu0 0.0
  %296 = vmatmul.mubr.f32.gmra.mrb[0].mxu0 %v225
  %v297 = vpop.f32.mrb[0].mxu0
  %v298 = vadd.f32 %v222, %v297
  %v299 = vpop.f32.mrb[0].mxu0
  %300 = vdwg.mxu0
  %v301 = vld [vmem:[%s3] sm:$0xff]
  %v302 = vld [vmem:[%s3 + $0x8] sm:$0xff]
  %v303 = vlaneseq
  %v304 = vshrl.u32 %v303, 7
  %v305 = vsub.s32 4, %v304
  %v306 = vrot.slane %v25, %v305
  %v307 = vmul.f32 %v208, %v306
  %v308 = vmul.f32 %v213, %v306
  %vm309 = vcmask 64512
  %v310 = vsel %vm309, %v307, 0.0
  %311 = vadd.xlane.f32.xlu0 %v310
  %v312 = vpop.xlane.xlu0 %311
  %vm313 = vcmask 60416
  %v314 = vsel %vm313, %v308, 0.0
  %315 = vadd.xlane.f32.xlu0 %v314
  %v316 = vpop.xlane.xlu0 %315
  %v317 = vlaneseq
  %v318 = vshrl.u32 %v317, 7
  %v319 = vsub.s32 3, %v318
  %v320 = vrot.slane %v25, %v319
  %v321 = vmul.f32 %v114, %v320
  %v322 = vmul.f32 %v119, %v320
  %v323 = vsel %vm309, %v321, 0.0
  %324 = vadd.xlane.f32.xlu0 %v323
  %v325 = vpop.xlane.xlu0 %324
  %v326 = vsel %vm309, %v322, 0.0
  %327 = vadd.xlane.f32.xlu0 %v326
  %v328 = vpop.xlane.xlu0 %327
  %329 = vxpose.xlu0.b32.start [1/16] %v325, 128
  %330 = vxpose.xlu0.b32.cont [2/16] %v328, 128
  %331 = vxpose.xlu0.b32.cont [3/16] 0.0, 128
  %332 = vxpose.xlu0.b32.cont [4/16] 0.0, 128
  %333 = vxpose.xlu0.b32.cont [5/16] 0.0, 128
  %334 = vxpose.xlu0.b32.cont [6/16] 0.0, 128
  %335 = vxpose.xlu0.b32.cont [7/16] 0.0, 128
  %336 = vxpose.xlu0.b32.cont [8/16] 0.0, 128
  %337 = vxpose.xlu0.b32.cont [9/16] 0.0, 128
  %338 = vxpose.xlu0.b32.cont [10/16] 0.0, 128
  %339 = vxpose.xlu0.b32.cont [11/16] 0.0, 128
  %340 = vxpose.xlu0.b32.cont [12/16] 0.0, 128
  %341 = vxpose.xlu0.b32.cont [13/16] 0.0, 128
  %342 = vxpose.xlu0.b32.cont [14/16] 0.0, 128
  %343 = vxpose.xlu0.b32.cont [15/16] 0.0, 128
  %344 = vxpose.xlu0.b32.end [16/16] 0.0, 128
  %v345 = vpop.trf.xlu0
  %v346 = vpop.trf.xlu0
  %v347 = vpop.trf.xlu0
  %v348 = vpop.trf.xlu0
  %v349 = vpop.trf.xlu0
  %v350 = vpop.trf.xlu0
  %v351 = vpop.trf.xlu0
  %v352 = vpop.trf.xlu0
  %v353 = vpop.trf.xlu0
  %v354 = vpop.trf.xlu0
  %v355 = vpop.trf.xlu0
  %v356 = vpop.trf.xlu0
  %v357 = vpop.trf.xlu0
  %v358 = vpop.trf.xlu0
  %v359 = vpop.trf.xlu0
  %v360 = vpop.trf.xlu0
  %v361 = vlaneseq
  %v362 = vshrl.u32 %v361, 7
  %v363 = vsub.s32 0, %v362
  %v364 = vrot.slane %v345, %v363
  %v365 = vadd.f32 %v312, %v364
  %v366 = vadd.f32 %v316, %v364
  %vm367 = vcmp.ge.f32.partialorder %v365, 0.0
  %vm368 = vcmp.ge.f32.partialorder %v366, 0.0
  %v369 = vmul.f32 %v365, 0.2
  %v370 = vmul.f32 %v366, 0.2
  %v371 = vsel %vm367, %v365, %v369
  %v372 = vsel %vm368, %v366, %v370
  %v373 = vadd.f32 %v371, %v301
  %v374 = vadd.f32 %v372, %v302
  %vm375 = vcmask 130048
  %v376 = vsel %vm375, %v373, -inf
  %377 = vmax.xlane.f32.xlu0 %v376
  %v378 = vpop.xlane.xlu0 %377
  %vm379 = vcmask 125952
  %v380 = vsel %vm379, %v374, -inf
  %381 = vmax.xlane.f32.xlu0 %v380
  %v382 = vpop.xlane.xlu0 %381
  %vm383 = vcmp.lt.f32.partialorder %v378, -1e+29
  %vm384 = vcmp.lt.f32.partialorder %v382, -1e+29
  %v385 = vsel %vm383, 0.0, %v378
  %v386 = vsel %vm384, 0.0, %v382
  %v387 = vsub.f32 %v373, %v385
  %v388 = vsub.f32 %v374, %v386
  %v389 = vmul.f32 %v387, 1.442695
  %v390 = vpow.pop %v389
  %v391 = vmul.f32 %v388, 1.442695
  %v392 = vpow.pop %v391
  %v393 = vsel %vm375, %v390, 0.0
  %394 = vadd.xlane.f32.xlu0 %v393
  %v395 = vpop.xlane.xlu0 %394
  %v396 = vsel %vm379, %v392, 0.0
  %397 = vadd.xlane.f32.xlu0 %v396
  %v398 = vpop.xlane.xlu0 %397
  %vm399 = vcmp.gt.f32.partialorder %v395, 0.0
  %vm400 = vcmp.gt.f32.partialorder %v398, 0.0
  %v401 = vsel %vm399, %v395, 1.0
  %v402 = vsel %vm400, %v398, 1.0
  %v403 = vrcp.pop %v401
  %v404 = vrcp.pop %v402
  %v405 = vmul.f32 %v390, %v403
  %v406 = vmul.f32 %v392, %v404
  %v408 = vsel %vm375, %v405, 0
  %v411 = vsel %vm375, %v406, 0
  %413 = vmatprep.subr.mxu0 0.0
  %414 = vmatpush1.msra.mxu0 %v114
  %415 = vmatprep.subr.mxu0 0.0
  %416 = vmatpush1.msra.mxu0 %v119
  %417 = vmatprep.subr.mxu0 0.0
  %418 = vmatpush1.msra.mxu0 0.0
  %419 = vmatprep.subr.mxu0 0.0
  %420 = vmatpush1.msra.mxu0 0.0
  %421 = vmatprep.subr.mxu0 0.0
  %422 = vmatpush1.msra.mxu0 0.0
  %423 = vmatprep.subr.mxu0 0.0
  %424 = vmatpush1.msra.mxu0 0.0
  %425 = vmatprep.subr.mxu0 0.0
  %426 = vmatpush1.msra.mxu0 0.0
  %427 = vmatprep.subr.mxu0 0.0
  %428 = vmatpush1.msra.mxu0 0.0
  %429 = vmatprep.subr.mxu0 0.0
  %430 = vmatpush1.msra.mxu0 0.0
  %431 = vmatprep.subr.mxu0 0.0
  %432 = vmatpush1.msra.mxu0 0.0
  %433 = vmatprep.subr.mxu0 0.0
  %434 = vmatpush1.msra.mxu0 0.0
  %435 = vmatprep.subr.mxu0 0.0
  %436 = vmatpush1.msra.mxu0 0.0
  %437 = vmatprep.subr.mxu0 0.0
  %438 = vmatpush1.msra.mxu0 0.0
  %439 = vmatprep.subr.mxu0 0.0
  %440 = vmatpush1.msra.mxu0 0.0
  %441 = vmatprep.subr.mxu0 0.0
  %442 = vmatpush1.msra.mxu0 0.0
  %443 = vmatprep.subr.mxu0 0.0
  %444 = vmatpush1.msra.mxu0 0.0
  %445 = vmatprep.subr.mxu0 0.0
  %446 = vmatpush1.msra.mxu0 0.0
  %447 = vmatprep.subr.mxu0 0.0
  %448 = vmatpush1.msra.mxu0 0.0
  %449 = vmatprep.subr.mxu0 0.0
  %450 = vmatpush1.msra.mxu0 0.0
  %451 = vmatprep.subr.mxu0 0.0
  %452 = vmatpush1.msra.mxu0 0.0
  %453 = vmatprep.subr.mxu0 0.0
  %454 = vmatpush1.msra.mxu0 0.0
  %455 = vmatprep.subr.mxu0 0.0
  %456 = vmatpush1.msra.mxu0 0.0
  %457 = vmatprep.subr.mxu0 0.0
  %458 = vmatpush1.msra.mxu0 0.0
  %459 = vmatprep.subr.mxu0 0.0
  %460 = vmatpush1.msra.mxu0 0.0
  %461 = vmatprep.subr.mxu0 0.0
  %462 = vmatpush1.msra.mxu0 0.0
  %463 = vmatprep.subr.mxu0 0.0
  %464 = vmatpush1.msra.mxu0 0.0
  %465 = vmatprep.subr.mxu0 0.0
  %466 = vmatpush1.msra.mxu0 0.0
  %467 = vmatprep.subr.mxu0 0.0
  %468 = vmatpush1.msra.mxu0 0.0
  %469 = vmatprep.subr.mxu0 0.0
  %470 = vmatpush1.msra.mxu0 0.0
  %471 = vmatprep.subr.mxu0 0.0
  %472 = vmatpush1.msra.mxu0 0.0
  %473 = vmatprep.subr.mxu0 0.0
  %474 = vmatpush1.msra.mxu0 0.0
  %475 = vmatprep.subr.mxu0 0.0
  %476 = vmatpush1.msra.mxu0 0.0
  %477 = vmatprep.mubr.f32.mxu0 0.0
  %478 = vmatmul.mubr.f32.gmra.mrb[0].mxu0 %v408
  %v479 = vpop.f32.mrb[0].mxu0
  %v480 = vadd.f32 0.0, %v479
  %v481 = vpop.f32.mrb[0].mxu0
  %482 = vmatprep.mubr.f32.mxu0 0.0
  %483 = vmatmul.mubr.f32.gmra.mrb[0].mxu0 %v411
  %v484 = vpop.f32.mrb[0].mxu0
  %v485 = vadd.f32 0.0, %v484
  %v486 = vpop.f32.mrb[0].mxu0
  %487 = vdwg.mxu0
  %v488 = vmax.f32 %v480, 0.0
  %v489 = vmax.f32 %v485, 0.0
  %s490 = scalar_lea.vmem %s3, 16
  %v491 = vld [vmem:[%s490] sm:$0xff]
  %v492 = vld [vmem:[%s490 + $0x8] sm:$0xff]
  %v493 = vlaneseq
  %v494 = vshrl.u32 %v493, 7
  %v495 = vsub.s32 6, %v494
  %v496 = vrot.slane %v25, %v495
  %v497 = vmul.f32 %v114, %v496
  %v498 = vmul.f32 %v119, %v496
  %v499 = vsel %vm309, %v497, 0.0
  %500 = vadd.xlane.f32.xlu0 %v499
  %v501 = vpop.xlane.xlu0 %500
  %v502 = vsel %vm309, %v498, 0.0
  %503 = vadd.xlane.f32.xlu0 %v502
  %v504 = vpop.xlane.xlu0 %503
  %v505 = vlaneseq
  %v506 = vshrl.u32 %v505, 7
  %v507 = vsub.s32 5, %v506
  %v508 = vrot.slane %v25, %v507
  %v509 = vmul.f32 %v208, %v508
  %v510 = vmul.f32 %v213, %v508
  %v511 = vsel %vm309, %v509, 0.0
  %512 = vadd.xlane.f32.xlu0 %v511
  %v513 = vpop.xlane.xlu0 %512
  %v514 = vsel %vm313, %v510, 0.0
  %515 = vadd.xlane.f32.xlu0 %v514
  %v516 = vpop.xlane.xlu0 %515
  %517 = vxpose.xlu0.b32.start [1/16] %v513, 128
  %518 = vxpose.xlu0.b32.cont [2/16] %v516, 128
  %519 = vxpose.xlu0.b32.cont [3/16] 0.0, 128
  %520 = vxpose.xlu0.b32.cont [4/16] 0.0, 128
  %521 = vxpose.xlu0.b32.cont [5/16] 0.0, 128
  %522 = vxpose.xlu0.b32.cont [6/16] 0.0, 128
  %523 = vxpose.xlu0.b32.cont [7/16] 0.0, 128
  %524 = vxpose.xlu0.b32.cont [8/16] 0.0, 128
  %525 = vxpose.xlu0.b32.cont [9/16] 0.0, 128
  %526 = vxpose.xlu0.b32.cont [10/16] 0.0, 128
  %527 = vxpose.xlu0.b32.cont [11/16] 0.0, 128
  %528 = vxpose.xlu0.b32.cont [12/16] 0.0, 128
  %529 = vxpose.xlu0.b32.cont [13/16] 0.0, 128
  %530 = vxpose.xlu0.b32.cont [14/16] 0.0, 128
  %531 = vxpose.xlu0.b32.cont [15/16] 0.0, 128
  %532 = vxpose.xlu0.b32.end [16/16] 0.0, 128
  %v533 = vpop.trf.xlu0
  %v534 = vpop.trf.xlu0
  %v535 = vpop.trf.xlu0
  %v536 = vpop.trf.xlu0
  %v537 = vpop.trf.xlu0
  %v538 = vpop.trf.xlu0
  %v539 = vpop.trf.xlu0
  %v540 = vpop.trf.xlu0
  %v541 = vpop.trf.xlu0
  %v542 = vpop.trf.xlu0
  %v543 = vpop.trf.xlu0
  %v544 = vpop.trf.xlu0
  %v545 = vpop.trf.xlu0
  %v546 = vpop.trf.xlu0
  %v547 = vpop.trf.xlu0
  %v548 = vpop.trf.xlu0
  %v549 = vlaneseq
  %v550 = vshrl.u32 %v549, 7
  %v551 = vsub.s32 0, %v550
  %v552 = vrot.slane %v533, %v551
  %v553 = vadd.f32 %v501, %v552
  %v554 = vadd.f32 %v504, %v552
  %vm555 = vcmp.ge.f32.partialorder %v553, 0.0
  %vm556 = vcmp.ge.f32.partialorder %v554, 0.0
  %v557 = vmul.f32 %v553, 0.2
  %v558 = vmul.f32 %v554, 0.2
  %v559 = vsel %vm555, %v553, %v557
  %v560 = vsel %vm556, %v554, %v558
  %v561 = vadd.f32 %v559, %v491
  %v562 = vadd.f32 %v560, %v492
  %vm563 = vcmask 97280
  %v564 = vsel %vm563, %v561, -inf
  %565 = vmax.xlane.f32.xlu0 %v564
  %v566 = vpop.xlane.xlu0 %565
  %v567 = vsel %vm563, %v562, -inf
  %568 = vmax.xlane.f32.xlu0 %v567
  %v569 = vpop.xlane.xlu0 %568
  %vm570 = vcmp.lt.f32.partialorder %v566, -1e+29
  %vm571 = vcmp.lt.f32.partialorder %v569, -1e+29
  %v572 = vsel %vm570, 0.0, %v566
  %v573 = vsel %vm571, 0.0, %v569
  %v574 = vsub.f32 %v561, %v572
  %v575 = vsub.f32 %v562, %v573
  %v576 = vmul.f32 %v574, 1.442695
  %v577 = vpow.pop %v576
  %v578 = vmul.f32 %v575, 1.442695
  %v579 = vpow.pop %v578
  %v580 = vsel %vm563, %v577, 0.0
  %581 = vadd.xlane.f32.xlu0 %v580
  %v582 = vpop.xlane.xlu0 %581
  %v583 = vsel %vm563, %v579, 0.0
  %584 = vadd.xlane.f32.xlu0 %v583
  %v585 = vpop.xlane.xlu0 %584
  %vm586 = vcmp.gt.f32.partialorder %v582, 0.0
  %vm587 = vcmp.gt.f32.partialorder %v585, 0.0
  %v588 = vsel %vm586, %v582, 1.0
  %v589 = vsel %vm587, %v585, 1.0
  %v590 = vrcp.pop %v588
  %v591 = vrcp.pop %v589
  %v592 = vmul.f32 %v577, %v590
  %v593 = vmul.f32 %v579, %v591
  %v595 = vsel %vm563, %v592, 0
  %v598 = vsel %vm563, %v593, 0
  %v601 = vsel %vm227, %v213, 0
  %603 = vmatprep.subr.mxu0 0.0
  %604 = vmatpush1.msra.mxu0 %v208
  %605 = vmatprep.subr.mxu0 0.0
  %606 = vmatpush1.msra.mxu0 %v601
  %607 = vmatprep.subr.mxu0 0.0
  %608 = vmatpush1.msra.mxu0 0.0
  %609 = vmatprep.subr.mxu0 0.0
  %610 = vmatpush1.msra.mxu0 0.0
  %611 = vmatprep.subr.mxu0 0.0
  %612 = vmatpush1.msra.mxu0 0.0
  %613 = vmatprep.subr.mxu0 0.0
  %614 = vmatpush1.msra.mxu0 0.0
  %615 = vmatprep.subr.mxu0 0.0
  %616 = vmatpush1.msra.mxu0 0.0
  %617 = vmatprep.subr.mxu0 0.0
  %618 = vmatpush1.msra.mxu0 0.0
  %619 = vmatprep.subr.mxu0 0.0
  %620 = vmatpush1.msra.mxu0 0.0
  %621 = vmatprep.subr.mxu0 0.0
  %622 = vmatpush1.msra.mxu0 0.0
  %623 = vmatprep.subr.mxu0 0.0
  %624 = vmatpush1.msra.mxu0 0.0
  %625 = vmatprep.subr.mxu0 0.0
  %626 = vmatpush1.msra.mxu0 0.0
  %627 = vmatprep.subr.mxu0 0.0
  %628 = vmatpush1.msra.mxu0 0.0
  %629 = vmatprep.subr.mxu0 0.0
  %630 = vmatpush1.msra.mxu0 0.0
  %631 = vmatprep.subr.mxu0 0.0
  %632 = vmatpush1.msra.mxu0 0.0
  %633 = vmatprep.subr.mxu0 0.0
  %634 = vmatpush1.msra.mxu0 0.0
  %635 = vmatprep.subr.mxu0 0.0
  %636 = vmatpush1.msra.mxu0 0.0
  %637 = vmatprep.subr.mxu0 0.0
  %638 = vmatpush1.msra.mxu0 0.0
  %639 = vmatprep.subr.mxu0 0.0
  %640 = vmatpush1.msra.mxu0 0.0
  %641 = vmatprep.subr.mxu0 0.0
  %642 = vmatpush1.msra.mxu0 0.0
  %643 = vmatprep.subr.mxu0 0.0
  %644 = vmatpush1.msra.mxu0 0.0
  %645 = vmatprep.subr.mxu0 0.0
  %646 = vmatpush1.msra.mxu0 0.0
  %647 = vmatprep.subr.mxu0 0.0
  %648 = vmatpush1.msra.mxu0 0.0
  %649 = vmatprep.subr.mxu0 0.0
  %650 = vmatpush1.msra.mxu0 0.0
  %651 = vmatprep.subr.mxu0 0.0
  %652 = vmatpush1.msra.mxu0 0.0
  %653 = vmatprep.subr.mxu0 0.0
  %654 = vmatpush1.msra.mxu0 0.0
  %655 = vmatprep.subr.mxu0 0.0
  %656 = vmatpush1.msra.mxu0 0.0
  %657 = vmatprep.subr.mxu0 0.0
  %658 = vmatpush1.msra.mxu0 0.0
  %659 = vmatprep.subr.mxu0 0.0
  %660 = vmatpush1.msra.mxu0 0.0
  %661 = vmatprep.subr.mxu0 0.0
  %662 = vmatpush1.msra.mxu0 0.0
  %663 = vmatprep.subr.mxu0 0.0
  %664 = vmatpush1.msra.mxu0 0.0
  %665 = vmatprep.subr.mxu0 0.0
  %666 = vmatpush1.msra.mxu0 0.0
  %667 = vmatprep.mubr.f32.mxu0 0.0
  %668 = vmatmul.mubr.f32.gmra.mrb[0].mxu0 %v595
  %v669 = vpop.f32.mrb[0].mxu0
  %v670 = vadd.f32 0.0, %v669
  %v671 = vpop.f32.mrb[0].mxu0
  %672 = vmatprep.mubr.f32.mxu0 0.0
  %673 = vmatmul.mubr.f32.gmra.mrb[0].mxu0 %v598
  %v674 = vpop.f32.mrb[0].mxu0
  %v675 = vadd.f32 0.0, %v674
  %v676 = vpop.f32.mrb[0].mxu0
  %677 = vdwg.mxu0
  %v678 = vmax.f32 %v670, 0.0
  %v679 = vmax.f32 %v675, 0.0
  %s680 = scalar_lea.vmem %s3, 32
  %v681 = vld [vmem:[%s680] sm:$0xff]
  %v682 = vld [vmem:[%s680 + $0x8] sm:$0xff]
  %v683 = vlaneseq
  %v684 = vshrl.u32 %v683, 7
  %v685 = vsub.s32 0, %v684
  %v686 = vrot.slane %v26, %v685
  %v687 = vmul.f32 %v114, %v686
  %v688 = vmul.f32 %v119, %v686
  %v689 = vsel %vm309, %v687, 0.0
  %690 = vadd.xlane.f32.xlu0 %v689
  %v691 = vpop.xlane.xlu0 %690
  %v692 = vsel %vm309, %v688, 0.0
  %693 = vadd.xlane.f32.xlu0 %v692
  %v694 = vpop.xlane.xlu0 %693
  %v695 = vlaneseq
  %v696 = vshrl.u32 %v695, 7
  %v697 = vsub.s32 7, %v696
  %v698 = vrot.slane %v25, %v697
  %v699 = vmul.f32 %v298, %v698
  %v700 = vsel %vm309, %v699, 0.0
  %701 = vadd.xlane.f32.xlu0 %v700
  %v702 = vpop.xlane.xlu0 %701
  %703 = vxpose.xlu0.b32.start [1/16] %v702, 128
  %704 = vxpose.xlu0.b32.cont [2/16] 0.0, 128
  %705 = vxpose.xlu0.b32.cont [3/16] 0.0, 128
  %706 = vxpose.xlu0.b32.cont [4/16] 0.0, 128
  %707 = vxpose.xlu0.b32.cont [5/16] 0.0, 128
  %708 = vxpose.xlu0.b32.cont [6/16] 0.0, 128
  %709 = vxpose.xlu0.b32.cont [7/16] 0.0, 128
  %710 = vxpose.xlu0.b32.cont [8/16] 0.0, 128
  %711 = vxpose.xlu0.b32.cont [9/16] 0.0, 128
  %712 = vxpose.xlu0.b32.cont [10/16] 0.0, 128
  %713 = vxpose.xlu0.b32.cont [11/16] 0.0, 128
  %714 = vxpose.xlu0.b32.cont [12/16] 0.0, 128
  %715 = vxpose.xlu0.b32.cont [13/16] 0.0, 128
  %716 = vxpose.xlu0.b32.cont [14/16] 0.0, 128
  %717 = vxpose.xlu0.b32.cont [15/16] 0.0, 128
  %718 = vxpose.xlu0.b32.end [16/16] 0.0, 128
  %v719 = vpop.trf.xlu0
  %v720 = vpop.trf.xlu0
  %v721 = vpop.trf.xlu0
  %v722 = vpop.trf.xlu0
  %v723 = vpop.trf.xlu0
  %v724 = vpop.trf.xlu0
  %v725 = vpop.trf.xlu0
  %v726 = vpop.trf.xlu0
  %v727 = vpop.trf.xlu0
  %v728 = vpop.trf.xlu0
  %v729 = vpop.trf.xlu0
  %v730 = vpop.trf.xlu0
  %v731 = vpop.trf.xlu0
  %v732 = vpop.trf.xlu0
  %v733 = vpop.trf.xlu0
  %v734 = vpop.trf.xlu0
  %v735 = vlaneseq
  %v736 = vshrl.u32 %v735, 7
  %v737 = vsub.s32 0, %v736
  %v738 = vrot.slane %v719, %v737
  %v739 = vadd.f32 %v691, %v738
  %v740 = vadd.f32 %v694, %v738
  %vm741 = vcmp.ge.f32.partialorder %v739, 0.0
  %vm742 = vcmp.ge.f32.partialorder %v740, 0.0
  %v743 = vmul.f32 %v739, 0.2
  %v744 = vmul.f32 %v740, 0.2
  %v745 = vsel %vm741, %v739, %v743
  %v746 = vsel %vm742, %v740, %v744
  %v747 = vadd.f32 %v745, %v681
  %v748 = vadd.f32 %v746, %v682
  %v749 = vsel %vm309, %v747, -inf
  %750 = vmax.xlane.f32.xlu0 %v749
  %v751 = vpop.xlane.xlu0 %750
  %v752 = vsel %vm309, %v748, -inf
  %753 = vmax.xlane.f32.xlu0 %v752
  %v754 = vpop.xlane.xlu0 %753
  %vm755 = vcmp.lt.f32.partialorder %v751, -1e+29
  %vm756 = vcmp.lt.f32.partialorder %v754, -1e+29
  %v757 = vsel %vm755, 0.0, %v751
  %v758 = vsel %vm756, 0.0, %v754
  %v759 = vsub.f32 %v747, %v757
  %v760 = vsub.f32 %v748, %v758
  %v761 = vmul.f32 %v759, 1.442695
  %v762 = vpow.pop %v761
  %v763 = vmul.f32 %v760, 1.442695
  %v764 = vpow.pop %v763
  %v765 = vsel %vm309, %v762, 0.0
  %766 = vadd.xlane.f32.xlu0 %v765
  %v767 = vpop.xlane.xlu0 %766
  %v768 = vsel %vm309, %v764, 0.0
  %769 = vadd.xlane.f32.xlu0 %v768
  %v770 = vpop.xlane.xlu0 %769
  %vm771 = vcmp.gt.f32.partialorder %v767, 0.0
  %vm772 = vcmp.gt.f32.partialorder %v770, 0.0
  %v773 = vsel %vm771, %v767, 1.0
  %v774 = vsel %vm772, %v770, 1.0
  %v775 = vrcp.pop %v773
  %v776 = vrcp.pop %v774
  %v777 = vmul.f32 %v762, %v775
  %v778 = vmul.f32 %v764, %v776
  %v780 = vsel %vm309, %v777, 0
  %v783 = vsel %vm309, %v778, 0
  %785 = vmatprep.subr.mxu0 0.0
  %786 = vmatpush1.msra.mxu0 %v298
  %787 = vmatprep.subr.mxu0 0.0
  %788 = vmatpush1.msra.mxu0 0.0
  %789 = vmatprep.subr.mxu0 0.0
  %790 = vmatpush1.msra.mxu0 0.0
  %791 = vmatprep.subr.mxu0 0.0
  %792 = vmatpush1.msra.mxu0 0.0
  %793 = vmatprep.subr.mxu0 0.0
  %794 = vmatpush1.msra.mxu0 0.0
  %795 = vmatprep.subr.mxu0 0.0
  %796 = vmatpush1.msra.mxu0 0.0
  %797 = vmatprep.subr.mxu0 0.0
  %798 = vmatpush1.msra.mxu0 0.0
  %799 = vmatprep.subr.mxu0 0.0
  %800 = vmatpush1.msra.mxu0 0.0
  %801 = vmatprep.subr.mxu0 0.0
  %802 = vmatpush1.msra.mxu0 0.0
  %803 = vmatprep.subr.mxu0 0.0
  %804 = vmatpush1.msra.mxu0 0.0
  %805 = vmatprep.subr.mxu0 0.0
  %806 = vmatpush1.msra.mxu0 0.0
  %807 = vmatprep.subr.mxu0 0.0
  %808 = vmatpush1.msra.mxu0 0.0
  %809 = vmatprep.subr.mxu0 0.0
  %810 = vmatpush1.msra.mxu0 0.0
  %811 = vmatprep.subr.mxu0 0.0
  %812 = vmatpush1.msra.mxu0 0.0
  %813 = vmatprep.subr.mxu0 0.0
  %814 = vmatpush1.msra.mxu0 0.0
  %815 = vmatprep.subr.mxu0 0.0
  %816 = vmatpush1.msra.mxu0 0.0
  %817 = vmatprep.subr.mxu0 0.0
  %818 = vmatpush1.msra.mxu0 0.0
  %819 = vmatprep.subr.mxu0 0.0
  %820 = vmatpush1.msra.mxu0 0.0
  %821 = vmatprep.subr.mxu0 0.0
  %822 = vmatpush1.msra.mxu0 0.0
  %823 = vmatprep.subr.mxu0 0.0
  %824 = vmatpush1.msra.mxu0 0.0
  %825 = vmatprep.subr.mxu0 0.0
  %826 = vmatpush1.msra.mxu0 0.0
  %827 = vmatprep.subr.mxu0 0.0
  %828 = vmatpush1.msra.mxu0 0.0
  %829 = vmatprep.subr.mxu0 0.0
  %830 = vmatpush1.msra.mxu0 0.0
  %831 = vmatprep.subr.mxu0 0.0
  %832 = vmatpush1.msra.mxu0 0.0
  %833 = vmatprep.subr.mxu0 0.0
  %834 = vmatpush1.msra.mxu0 0.0
  %835 = vmatprep.subr.mxu0 0.0
  %836 = vmatpush1.msra.mxu0 0.0
  %837 = vmatprep.subr.mxu0 0.0
  %838 = vmatpush1.msra.mxu0 0.0
  %839 = vmatprep.subr.mxu0 0.0
  %840 = vmatpush1.msra.mxu0 0.0
  %841 = vmatprep.subr.mxu0 0.0
  %842 = vmatpush1.msra.mxu0 0.0
  %843 = vmatprep.subr.mxu0 0.0
  %844 = vmatpush1.msra.mxu0 0.0
  %845 = vmatprep.subr.mxu0 0.0
  %846 = vmatpush1.msra.mxu0 0.0
  %847 = vmatprep.subr.mxu0 0.0
  %848 = vmatpush1.msra.mxu0 0.0
  %849 = vmatprep.mubr.f32.mxu0 0.0
  %850 = vmatmul.mubr.f32.gmra.mrb[0].mxu0 %v780
  %v851 = vpop.f32.mrb[0].mxu0
  %v852 = vadd.f32 0.0, %v851
  %v853 = vpop.f32.mrb[0].mxu0
  %854 = vmatprep.mubr.f32.mxu0 0.0
  %855 = vmatmul.mubr.f32.gmra.mrb[0].mxu0 %v783
  %v856 = vpop.f32.mrb[0].mxu0
  %v857 = vadd.f32 0.0, %v856
  %v858 = vpop.f32.mrb[0].mxu0
  %859 = vdwg.mxu0
  %v860 = vmax.f32 %v852, 0.0
  %v861 = vmax.f32 %v857, 0.0
  %v862 = vlaneseq
  %v863 = vshrl.u32 %v862, 7
  %v864 = vsub.s32 1, %v863
  %v865 = vrot.slane %v27, %v864
  %vm868 = vcmask 1046528
  %v869 = vrot.slane %v26, 1
  %v870 = vrot.slane %v27, 1
  %v871 = vsel %vm868, %v869, %v870
  %v874 = vsel %vm309, %v678, 0
  %v877 = vsel %vm309, %v679, 0
  %879 = vmatprep.subr.mxu0 0.0
  %880 = vmatpush1.msra.mxu0 %v871
  %881 = vmatprep.subr.mxu0 0.0
  %882 = vmatpush1.msra.mxu0 0.0
  %883 = vmatprep.subr.mxu0 0.0
  %884 = vmatpush1.msra.mxu0 0.0
  %885 = vmatprep.subr.mxu0 0.0
  %886 = vmatpush1.msra.mxu0 0.0
  %887 = vmatprep.subr.mxu0 0.0
  %888 = vmatpush1.msra.mxu0 0.0
  %889 = vmatprep.subr.mxu0 0.0
  %890 = vmatpush1.msra.mxu0 0.0
  %891 = vmatprep.subr.mxu0 0.0
  %892 = vmatpush1.msra.mxu0 0.0
  %893 = vmatprep.subr.mxu0 0.0
  %894 = vmatpush1.msra.mxu0 0.0
  %895 = vmatprep.subr.mxu0 0.0
  %896 = vmatpush1.msra.mxu0 0.0
  %897 = vmatprep.subr.mxu0 0.0
  %898 = vmatpush1.msra.mxu0 0.0
  %899 = vmatprep.subr.mxu0 0.0
  %900 = vmatpush1.msra.mxu0 0.0
  %901 = vmatprep.subr.mxu0 0.0
  %902 = vmatpush1.msra.mxu0 0.0
  %903 = vmatprep.subr.mxu0 0.0
  %904 = vmatpush1.msra.mxu0 0.0
  %905 = vmatprep.subr.mxu0 0.0
  %906 = vmatpush1.msra.mxu0 0.0
  %907 = vmatprep.subr.mxu0 0.0
  %908 = vmatpush1.msra.mxu0 0.0
  %909 = vmatprep.subr.mxu0 0.0
  %910 = vmatpush1.msra.mxu0 0.0
  %911 = vmatprep.subr.mxu0 0.0
  %912 = vmatpush1.msra.mxu0 0.0
  %913 = vmatprep.subr.mxu0 0.0
  %914 = vmatpush1.msra.mxu0 0.0
  %915 = vmatprep.subr.mxu0 0.0
  %916 = vmatpush1.msra.mxu0 0.0
  %917 = vmatprep.subr.mxu0 0.0
  %918 = vmatpush1.msra.mxu0 0.0
  %919 = vmatprep.subr.mxu0 0.0
  %920 = vmatpush1.msra.mxu0 0.0
  %921 = vmatprep.subr.mxu0 0.0
  %922 = vmatpush1.msra.mxu0 0.0
  %923 = vmatprep.subr.mxu0 0.0
  %924 = vmatpush1.msra.mxu0 0.0
  %925 = vmatprep.subr.mxu0 0.0
  %926 = vmatpush1.msra.mxu0 0.0
  %927 = vmatprep.subr.mxu0 0.0
  %928 = vmatpush1.msra.mxu0 0.0
  %929 = vmatprep.subr.mxu0 0.0
  %930 = vmatpush1.msra.mxu0 0.0
  %931 = vmatprep.subr.mxu0 0.0
  %932 = vmatpush1.msra.mxu0 0.0
  %933 = vmatprep.subr.mxu0 0.0
  %934 = vmatpush1.msra.mxu0 0.0
  %935 = vmatprep.subr.mxu0 0.0
  %936 = vmatpush1.msra.mxu0 0.0
  %937 = vmatprep.subr.mxu0 0.0
  %938 = vmatpush1.msra.mxu0 0.0
  %939 = vmatprep.subr.mxu0 0.0
  %940 = vmatpush1.msra.mxu0 0.0
  %941 = vmatprep.subr.mxu0 0.0
  %942 = vmatpush1.msra.mxu0 0.0
  %943 = vmatprep.mubr.f32.mxu0 0.0
  %944 = vmatmul.mubr.f32.gmra.mrb[0].mxu0 %v874
  %v945 = vpop.f32.mrb[0].mxu0
  %v946 = vadd.f32 %v865, %v945
  %v947 = vpop.f32.mrb[0].mxu0
  %948 = vmatprep.mubr.f32.mxu0 0.0
  %949 = vmatmul.mubr.f32.gmra.mrb[0].mxu0 %v877
  %v950 = vpop.f32.mrb[0].mxu0
  %v951 = vadd.f32 %v865, %v950
  %v952 = vpop.f32.mrb[0].mxu0
  %953 = vdwg.mxu0
  %v954 = vtanh.pop %v946
  %v955 = vtanh.pop %v951
  %v956 = vsel %vm309, %v954, 0.0
  %v957 = vsel %vm309, %v955, 0.0
  %v958 = vadd.f32 %v956, %v957
  %v959 = vrot.slane %v958, 4
  %v960 = vadd.f32 %v958, %v959
  %v961 = vrot.slane %v960, 2
  %v962 = vadd.f32 %v960, %v961
  %v963 = vrot.slane %v962, 1
  %v964 = vadd.f32 %v962, %v963
  %v965 = vmul.f32 %v964, 0.0625
  %v966 = vmul.f32 %v27, %v965
  %vm967 = vcmask 59394
  %v968 = vsel %vm967, %v966, 0.0
  %969 = vadd.xlane.f32.xlu0 %v968
  %v970 = vpop.xlane.xlu0 %969
  %v972 = vsel %vm309, %v860, 0
  %v975 = vsel %vm309, %v861, 0
  %977 = vmatprep.subr.mxu0 0.0
  %978 = vmatpush1.msra.mxu0 %v871
  %979 = vmatprep.subr.mxu0 0.0
  %980 = vmatpush1.msra.mxu0 0.0
  %981 = vmatprep.subr.mxu0 0.0
  %982 = vmatpush1.msra.mxu0 0.0
  %983 = vmatprep.subr.mxu0 0.0
  %984 = vmatpush1.msra.mxu0 0.0
  %985 = vmatprep.subr.mxu0 0.0
  %986 = vmatpush1.msra.mxu0 0.0
  %987 = vmatprep.subr.mxu0 0.0
  %988 = vmatpush1.msra.mxu0 0.0
  %989 = vmatprep.subr.mxu0 0.0
  %990 = vmatpush1.msra.mxu0 0.0
  %991 = vmatprep.subr.mxu0 0.0
  %992 = vmatpush1.msra.mxu0 0.0
  %993 = vmatprep.subr.mxu0 0.0
  %994 = vmatpush1.msra.mxu0 0.0
  %995 = vmatprep.subr.mxu0 0.0
  %996 = vmatpush1.msra.mxu0 0.0
  %997 = vmatprep.subr.mxu0 0.0
  %998 = vmatpush1.msra.mxu0 0.0
  %999 = vmatprep.subr.mxu0 0.0
  %1000 = vmatpush1.msra.mxu0 0.0
  %1001 = vmatprep.subr.mxu0 0.0
  %1002 = vmatpush1.msra.mxu0 0.0
  %1003 = vmatprep.subr.mxu0 0.0
  %1004 = vmatpush1.msra.mxu0 0.0
  %1005 = vmatprep.subr.mxu0 0.0
  %1006 = vmatpush1.msra.mxu0 0.0
  %1007 = vmatprep.subr.mxu0 0.0
  %1008 = vmatpush1.msra.mxu0 0.0
  %1009 = vmatprep.subr.mxu0 0.0
  %1010 = vmatpush1.msra.mxu0 0.0
  %1011 = vmatprep.subr.mxu0 0.0
  %1012 = vmatpush1.msra.mxu0 0.0
  %1013 = vmatprep.subr.mxu0 0.0
  %1014 = vmatpush1.msra.mxu0 0.0
  %1015 = vmatprep.subr.mxu0 0.0
  %1016 = vmatpush1.msra.mxu0 0.0
  %1017 = vmatprep.subr.mxu0 0.0
  %1018 = vmatpush1.msra.mxu0 0.0
  %1019 = vmatprep.subr.mxu0 0.0
  %1020 = vmatpush1.msra.mxu0 0.0
  %1021 = vmatprep.subr.mxu0 0.0
  %1022 = vmatpush1.msra.mxu0 0.0
  %1023 = vmatprep.subr.mxu0 0.0
  %1024 = vmatpush1.msra.mxu0 0.0
  %1025 = vmatprep.subr.mxu0 0.0
  %1026 = vmatpush1.msra.mxu0 0.0
  %1027 = vmatprep.subr.mxu0 0.0
  %1028 = vmatpush1.msra.mxu0 0.0
  %1029 = vmatprep.subr.mxu0 0.0
  %1030 = vmatpush1.msra.mxu0 0.0
  %1031 = vmatprep.subr.mxu0 0.0
  %1032 = vmatpush1.msra.mxu0 0.0
  %1033 = vmatprep.subr.mxu0 0.0
  %1034 = vmatpush1.msra.mxu0 0.0
  %1035 = vmatprep.subr.mxu0 0.0
  %1036 = vmatpush1.msra.mxu0 0.0
  %1037 = vmatprep.subr.mxu0 0.0
  %1038 = vmatpush1.msra.mxu0 0.0
  %1039 = vmatprep.subr.mxu0 0.0
  %1040 = vmatpush1.msra.mxu0 0.0
  %1041 = vmatprep.mubr.f32.mxu0 0.0
  %1042 = vmatmul.mubr.f32.gmra.mrb[0].mxu0 %v972
  %v1043 = vpop.f32.mrb[0].mxu0
  %v1044 = vadd.f32 %v865, %v1043
  %v1045 = vpop.f32.mrb[0].mxu0
  %1046 = vmatprep.mubr.f32.mxu0 0.0
  %1047 = vmatmul.mubr.f32.gmra.mrb[0].mxu0 %v975
  %v1048 = vpop.f32.mrb[0].mxu0
  %v1049 = vadd.f32 %v865, %v1048
  %v1050 = vpop.f32.mrb[0].mxu0
  %1051 = vdwg.mxu0
  %v1052 = vtanh.pop %v1044
  %v1053 = vtanh.pop %v1049
  %v1054 = vsel %vm309, %v1052, 0.0
  %v1055 = vsel %vm309, %v1053, 0.0
  %v1056 = vadd.f32 %v1054, %v1055
  %v1057 = vrot.slane %v1056, 4
  %v1058 = vadd.f32 %v1056, %v1057
  %v1059 = vrot.slane %v1058, 2
  %v1060 = vadd.f32 %v1058, %v1059
  %v1061 = vrot.slane %v1060, 1
  %v1062 = vadd.f32 %v1060, %v1061
  %v1063 = vmul.f32 %v1062, 0.0625
  %v1064 = vmul.f32 %v27, %v1063
  %v1065 = vsel %vm967, %v1064, 0.0
  %1066 = vadd.xlane.f32.xlu0 %v1065
  %v1067 = vpop.xlane.xlu0 %1066
  %v1068 = vmax.f32 %v970, %v1067
  %v1069 = vsub.f32 %v970, %v1068
  %v1070 = vmul.f32 %v1069, 1.442695
  %v1071 = vpow.pop %v1070
  %v1072 = vsub.f32 %v1067, %v1068
  %v1073 = vmul.f32 %v1072, 1.442695
  %v1074 = vpow.pop %v1073
  %v1075 = vadd.f32 %v1071, %v1074
  %v1076 = vrcp.pop %v1075
  %v1077 = vmul.f32 1.0, %v1076
  %v1078 = vmul.f32 %v1071, %v1077
  %v1079 = vlaneseq
  %v1080 = vshrl.u32 %v1079, 7
  %v1081 = vsub.s32 2, %v1080
  %v1082 = vrot.slane %v1078, %v1081
  %v1083 = vmul.f32 %v1082, %v678
  %v1084 = vmul.f32 %v1082, %v679
  %v1085 = vmul.f32 %v1074, %v1077
  %v1086 = vlaneseq
  %v1087 = vshrl.u32 %v1086, 7
  %v1088 = vsub.s32 2, %v1087
  %v1089 = vrot.slane %v1085, %v1088
  %v1090 = vmul.f32 %v1089, %v860
  %v1091 = vmul.f32 %v1089, %v861
  %v1092 = vadd.f32 %v1083, %v1090
  %v1093 = vadd.f32 %v1084, %v1091
  %v1094 = vlaneseq
  %v1095 = vshrl.u32 %v1094, 7
  %v1096 = vsub.s32 3, %v1095
  %v1097 = vrot.slane %v28, %v1096
  %v1099 = vrot.slane %v27, 3
  %v1100 = vrot.slane %v28, 3
  %v1101 = vsel %vm137, %v1099, %v1100
  %v1104 = vsel %vm309, %v1092, 0
  %v1107 = vsel %vm309, %v1093, 0
  %1109 = vmatprep.subr.mxu0 0.0
  %1110 = vmatpush1.msra.mxu0 %v1101
  %1111 = vmatprep.subr.mxu0 0.0
  %1112 = vmatpush1.msra.mxu0 0.0
  %1113 = vmatprep.subr.mxu0 0.0
  %1114 = vmatpush1.msra.mxu0 0.0
  %1115 = vmatprep.subr.mxu0 0.0
  %1116 = vmatpush1.msra.mxu0 0.0
  %1117 = vmatprep.subr.mxu0 0.0
  %1118 = vmatpush1.msra.mxu0 0.0
  %1119 = vmatprep.subr.mxu0 0.0
  %1120 = vmatpush1.msra.mxu0 0.0
  %1121 = vmatprep.subr.mxu0 0.0
  %1122 = vmatpush1.msra.mxu0 0.0
  %1123 = vmatprep.subr.mxu0 0.0
  %1124 = vmatpush1.msra.mxu0 0.0
  %1125 = vmatprep.subr.mxu0 0.0
  %1126 = vmatpush1.msra.mxu0 0.0
  %1127 = vmatprep.subr.mxu0 0.0
  %1128 = vmatpush1.msra.mxu0 0.0
  %1129 = vmatprep.subr.mxu0 0.0
  %1130 = vmatpush1.msra.mxu0 0.0
  %1131 = vmatprep.subr.mxu0 0.0
  %1132 = vmatpush1.msra.mxu0 0.0
  %1133 = vmatprep.subr.mxu0 0.0
  %1134 = vmatpush1.msra.mxu0 0.0
  %1135 = vmatprep.subr.mxu0 0.0
  %1136 = vmatpush1.msra.mxu0 0.0
  %1137 = vmatprep.subr.mxu0 0.0
  %1138 = vmatpush1.msra.mxu0 0.0
  %1139 = vmatprep.subr.mxu0 0.0
  %1140 = vmatpush1.msra.mxu0 0.0
  %1141 = vmatprep.subr.mxu0 0.0
  %1142 = vmatpush1.msra.mxu0 0.0
  %1143 = vmatprep.subr.mxu0 0.0
  %1144 = vmatpush1.msra.mxu0 0.0
  %1145 = vmatprep.subr.mxu0 0.0
  %1146 = vmatpush1.msra.mxu0 0.0
  %1147 = vmatprep.subr.mxu0 0.0
  %1148 = vmatpush1.msra.mxu0 0.0
  %1149 = vmatprep.subr.mxu0 0.0
  %1150 = vmatpush1.msra.mxu0 0.0
  %1151 = vmatprep.subr.mxu0 0.0
  %1152 = vmatpush1.msra.mxu0 0.0
  %1153 = vmatprep.subr.mxu0 0.0
  %1154 = vmatpush1.msra.mxu0 0.0
  %1155 = vmatprep.subr.mxu0 0.0
  %1156 = vmatpush1.msra.mxu0 0.0
  %1157 = vmatprep.subr.mxu0 0.0
  %1158 = vmatpush1.msra.mxu0 0.0
  %1159 = vmatprep.subr.mxu0 0.0
  %1160 = vmatpush1.msra.mxu0 0.0
  %1161 = vmatprep.subr.mxu0 0.0
  %1162 = vmatpush1.msra.mxu0 0.0
  %1163 = vmatprep.subr.mxu0 0.0
  %1164 = vmatpush1.msra.mxu0 0.0
  %1165 = vmatprep.subr.mxu0 0.0
  %1166 = vmatpush1.msra.mxu0 0.0
  %1167 = vmatprep.subr.mxu0 0.0
  %1168 = vmatpush1.msra.mxu0 0.0
  %1169 = vmatprep.subr.mxu0 0.0
  %1170 = vmatpush1.msra.mxu0 0.0
  %1171 = vmatprep.subr.mxu0 0.0
  %1172 = vmatpush1.msra.mxu0 0.0
  %1173 = vmatprep.mubr.f32.mxu0 0.0
  %1174 = vmatmul.mubr.f32.gmra.mrb[0].mxu0 %v1104
  %v1175 = vpop.f32.mrb[0].mxu0
  %v1176 = vadd.f32 %v1097, %v1175
  %v1177 = vpop.f32.mrb[0].mxu0
  %1178 = vmatprep.mubr.f32.mxu0 0.0
  %1179 = vmatmul.mubr.f32.gmra.mrb[0].mxu0 %v1107
  %v1180 = vpop.f32.mrb[0].mxu0
  %v1181 = vadd.f32 %v1097, %v1180
  %v1182 = vpop.f32.mrb[0].mxu0
  %1183 = vdwg.mxu0
  %v1184 = vand.u32 2147483647, %v1176
  %v1185 = vand.u32 2147483647, %v1181
  %v1186 = vsub.f32 0.0, %v1184
  %v1187 = vsub.f32 0.0, %v1185
  %v1188 = vmul.f32 %v1186, 1.442695
  %v1189 = vpow.pop %v1188
  %v1190 = vmul.f32 %v1187, 1.442695
  %v1191 = vpow.pop %v1190
  %vm1192 = vcmp.ge.f32.partialorder %v1176, 0.0
  %vm1193 = vcmp.ge.f32.partialorder %v1181, 0.0
  %v1194 = vadd.f32 %v1189, 1.0
  %v1195 = vadd.f32 %v1191, 1.0
  %v1196 = vrcp.pop %v1194
  %v1197 = vmul.f32 1.0, %v1196
  %v1198 = vrcp.pop %v1195
  %v1199 = vmul.f32 1.0, %v1198
  %v1200 = vmul.f32 %v1189, %v1196
  %v1201 = vmul.f32 %v1191, %v1198
  %v1202 = vsel %vm1192, %v1197, %v1200
  %v1203 = vsel %vm1193, %v1199, %v1201
  %1204 = vst.msk [vmem:[%s6] sm:$0xff] %vm309, %v1202
  %1205 = vst.msk [vmem:[%s6 + $0x8] sm:$0xff] %vm309, %v1203
  %v1207 = vsel %vm309, %v488, 0
  %v1210 = vsel %vm309, %v489, 0
  %1212 = vmatprep.subr.mxu0 0.0
  %1213 = vmatpush1.msra.mxu0 %v1101
  %1214 = vmatprep.subr.mxu0 0.0
  %1215 = vmatpush1.msra.mxu0 0.0
  %1216 = vmatprep.subr.mxu0 0.0
  %1217 = vmatpush1.msra.mxu0 0.0
  %1218 = vmatprep.subr.mxu0 0.0
  %1219 = vmatpush1.msra.mxu0 0.0
  %1220 = vmatprep.subr.mxu0 0.0
  %1221 = vmatpush1.msra.mxu0 0.0
  %1222 = vmatprep.subr.mxu0 0.0
  %1223 = vmatpush1.msra.mxu0 0.0
  %1224 = vmatprep.subr.mxu0 0.0
  %1225 = vmatpush1.msra.mxu0 0.0
  %1226 = vmatprep.subr.mxu0 0.0
  %1227 = vmatpush1.msra.mxu0 0.0
  %1228 = vmatprep.subr.mxu0 0.0
  %1229 = vmatpush1.msra.mxu0 0.0
  %1230 = vmatprep.subr.mxu0 0.0
  %1231 = vmatpush1.msra.mxu0 0.0
  %1232 = vmatprep.subr.mxu0 0.0
  %1233 = vmatpush1.msra.mxu0 0.0
  %1234 = vmatprep.subr.mxu0 0.0
  %1235 = vmatpush1.msra.mxu0 0.0
  %1236 = vmatprep.subr.mxu0 0.0
  %1237 = vmatpush1.msra.mxu0 0.0
  %1238 = vmatprep.subr.mxu0 0.0
  %1239 = vmatpush1.msra.mxu0 0.0
  %1240 = vmatprep.subr.mxu0 0.0
  %1241 = vmatpush1.msra.mxu0 0.0
  %1242 = vmatprep.subr.mxu0 0.0
  %1243 = vmatpush1.msra.mxu0 0.0
  %1244 = vmatprep.subr.mxu0 0.0
  %1245 = vmatpush1.msra.mxu0 0.0
  %1246 = vmatprep.subr.mxu0 0.0
  %1247 = vmatpush1.msra.mxu0 0.0
  %1248 = vmatprep.subr.mxu0 0.0
  %1249 = vmatpush1.msra.mxu0 0.0
  %1250 = vmatprep.subr.mxu0 0.0
  %1251 = vmatpush1.msra.mxu0 0.0
  %1252 = vmatprep.subr.mxu0 0.0
  %1253 = vmatpush1.msra.mxu0 0.0
  %1254 = vmatprep.subr.mxu0 0.0
  %1255 = vmatpush1.msra.mxu0 0.0
  %1256 = vmatprep.subr.mxu0 0.0
  %1257 = vmatpush1.msra.mxu0 0.0
  %1258 = vmatprep.subr.mxu0 0.0
  %1259 = vmatpush1.msra.mxu0 0.0
  %1260 = vmatprep.subr.mxu0 0.0
  %1261 = vmatpush1.msra.mxu0 0.0
  %1262 = vmatprep.subr.mxu0 0.0
  %1263 = vmatpush1.msra.mxu0 0.0
  %1264 = vmatprep.subr.mxu0 0.0
  %1265 = vmatpush1.msra.mxu0 0.0
  %1266 = vmatprep.subr.mxu0 0.0
  %1267 = vmatpush1.msra.mxu0 0.0
  %1268 = vmatprep.subr.mxu0 0.0
  %1269 = vmatpush1.msra.mxu0 0.0
  %1270 = vmatprep.subr.mxu0 0.0
  %1271 = vmatpush1.msra.mxu0 0.0
  %1272 = vmatprep.subr.mxu0 0.0
  %1273 = vmatpush1.msra.mxu0 0.0
  %1274 = vmatprep.subr.mxu0 0.0
  %1275 = vmatpush1.msra.mxu0 0.0
  %1276 = vmatprep.mubr.f32.mxu0 0.0
  %1277 = vmatmul.mubr.f32.gmra.mrb[0].mxu0 %v1207
  %v1278 = vpop.f32.mrb[0].mxu0
  %v1279 = vadd.f32 %v1097, %v1278
  %v1280 = vpop.f32.mrb[0].mxu0
  %1281 = vmatprep.mubr.f32.mxu0 0.0
  %1282 = vmatmul.mubr.f32.gmra.mrb[0].mxu0 %v1210
  %v1283 = vpop.f32.mrb[0].mxu0
  %v1284 = vadd.f32 %v1097, %v1283
  %v1285 = vpop.f32.mrb[0].mxu0
  %1286 = vdwg.mxu0
  %v1287 = vand.u32 2147483647, %v1279
  %v1288 = vand.u32 2147483647, %v1284
  %v1289 = vsub.f32 0.0, %v1287
  %v1290 = vsub.f32 0.0, %v1288
  %v1291 = vmul.f32 %v1289, 1.442695
  %v1292 = vpow.pop %v1291
  %v1293 = vmul.f32 %v1290, 1.442695
  %v1294 = vpow.pop %v1293
  %vm1295 = vcmp.ge.f32.partialorder %v1279, 0.0
  %vm1296 = vcmp.ge.f32.partialorder %v1284, 0.0
  %v1297 = vadd.f32 %v1292, 1.0
  %v1298 = vadd.f32 %v1294, 1.0
  %v1299 = vrcp.pop %v1297
  %v1300 = vmul.f32 1.0, %v1299
  %v1301 = vrcp.pop %v1298
  %v1302 = vmul.f32 1.0, %v1301
  %v1303 = vmul.f32 %v1292, %v1299
  %v1304 = vmul.f32 %v1294, %v1301
  %v1305 = vsel %vm1295, %v1300, %v1303
  %v1306 = vsel %vm1296, %v1302, %v1304
  %1307 = vst.msk [vmem:[%s7] sm:$0xff] %vm309, %v1305
  %1308 = vst.msk [vmem:[%s7 + $0x8] sm:$0xf] %vm313, %v1306
  // Predicated region
  $region26: #{han1layer_forward.1} parent=0 // pred_check
    _
  $region27: #{han1layer_forward.1} parent=0 // pred_check_branch
    %1310 = sbr.rel (0) target = $region29
  $region28: #{han1layer_forward.1} parent=0 // pred_region
    _
  $region29: #{han1layer_forward.1} parent=0 // pred_fallthru
    _
  // Predicated region
  $region30: #{han1layer_forward.1} parent=0 // pred_check
    _
  $region31: #{han1layer_forward.1} parent=0 // pred_check_branch
    %1312 = sbr.rel (0) target = $region33
  $region32: #{han1layer_forward.1} parent=0 // pred_region
    _
  $region33: #{han1layer_forward.1} parent=0 // pred_fallthru
    _
  // Predicated region
  $region34: #{han1layer_forward.1} parent=0 // pred_check
    _
  $region35: #{han1layer_forward.1} parent=0 // pred_check_branch
    %1314 = sbr.rel (0) target = $region37
  $region36: #{han1layer_forward.1} parent=0 // pred_region
    _
  $region37: #{han1layer_forward.1} parent=0 // pred_fallthru
    _
  // Predicated region
  $region38: #{han1layer_forward.1} parent=0 // pred_check
    _
  $region39: #{han1layer_forward.1} parent=0 // pred_check_branch
    %1316 = sbr.rel (0) target = $region41
  $region40: #{han1layer_forward.1} parent=0 // pred_region
    _
  $region41: #{han1layer_forward.1} parent=0 // pred_fallthru
    _

</llo_original>
